<compile_context>
chip_gen: v7x
topology: tpu7x:2x2x1
jax: 0.10.0
libtpu: 0.0.40
codegen_flags: <defaults>
</compile_context>

<pallas_src>
import math
import jax
import jax.numpy as jnp
from jax.experimental import pallas as pl
from jax.experimental.pallas import tpu as pltpu

LN_EPS = 1e-5  # nn.LayerNorm default
_SQRT_2_OVER_PI = math.sqrt(2.0 / math.pi)


# ----------------------------- shared math helpers ---------------------------------------------

def _gelu(x):
    # tanh-approximate GELU (per perf review: one EUP tanh, no approx reciprocal).
    # torch nn.GELU() default is erf-based; the two differ by < ~3e-3 absolute.
    return 0.5 * x * (1.0 + jnp.tanh(_SQRT_2_OVER_PI * (x + 0.044715 * x * x * x)))


def _layernorm(x, gamma, beta):
    mu = jnp.mean(x, axis=-1, keepdims=True)
    var = jnp.mean((x - mu) ** 2, axis=-1, keepdims=True)  # biased variance (torch LN)
    return (x - mu) * jax.lax.rsqrt(var + LN_EPS) * gamma + beta


# ----------------------------- generation-aware knobs -------------------------------------------

def _device_kind():
    try:
        return jax.devices()[0].device_kind.lower()
    except Exception:
        return ""


def _vmem_limit_bytes():
    kind = _device_kind()
    if "v7" in kind:
        return 48 * 1024 * 1024            # 64 MiB physical on v7x -> leave headroom
    if any(t in kind for t in ("v5 lite", "v5e", "v5litepod", "v6", "trillium")):
        return 96 * 1024 * 1024            # 128 MiB physical on v5e / v6e
    return None                            # unknown generation: keep the compiler default


def _compiler_params(dimension_semantics):
    vb = _vmem_limit_bytes()
    if vb is None:
        return pltpu.CompilerParams(dimension_semantics=dimension_semantics)
    return pltpu.CompilerParams(dimension_semantics=dimension_semantics, vmem_limit_bytes=vb)


def _pick_batch_block(batch):
    # Single-TC (v5e/v6e): mb = B, nb = 1 (weights streamed once, biggest M on the MXU).
    # v7x has 2 TensorCores: keep nb = 2 so both cores get a batch block.
    kind = _device_kind()
    if "v7" in kind and batch % 2 == 0:
        return batch // 2
    return batch


# ----------------------------- fused MixerBlock stack kernel ------------------------------------

def _make_stack_kernel(*, n_enc, split_i, mb, T, D, Dh):
    def kernel(x_ref, convw_ref, vec_ref, w1_ref, w2_ref, o_ref):
        l = pl.program_id(1)  # layer index ("arbitrary" axis; activation stays resident)

        # Layer 0: load the input activation into the resident output block.
        @pl.when(l == 0)
        def _init():
            o_ref[...] = x_ref[...]

        # First decoder layer: zero the tail of the sequence (autoencoding split), fused here.
        @pl.when(l == n_enc)
        def _zero_tail():
            t_iota = jax.lax.broadcasted_iota(jnp.int32, (mb, T, D), 1)
            o_ref[...] = jnp.where(t_iota < split_i, o_ref[...], 0.0)

        # Unpack the per-layer small vectors (single packed DMA block).
        seq_g = vec_ref[0:1, 0:D]               # (1, D)
        seq_b = vec_ref[1:2, 0:D]
        pat_g = vec_ref[2:3, 0:D]
        pat_b = vec_ref[3:4, 0:D]
        b1 = vec_ref[4:5, :]                    # (1, Dh)
        b2 = vec_ref[5:6, 0:D]                  # (1, D)
        conv_b = vec_ref[8:8 + T, 0:1]          # (T, 1)  (broadcasts over batch and features)

        x3 = o_ref[...].astype(jnp.float32)                                   # (mb, T, D)

        # --- sequence (token) mixing: LN -> causal tril(T,T) matmul (== Conv1d k=1) -> +res ---
        xn = _layernorm(x3, seq_g, seq_b)
        cwb = jnp.broadcast_to(convw_ref[...], (mb, T, T))                     # bf16
        mixed = jnp.einsum("mtk,mkd->mtd", cwb, xn.astype(jnp.bfloat16),
                           preferred_element_type=jnp.float32) + conv_b
        x3 = mixed + x3

        # --- channel (patch) mixing: LN -> Linear(D,4D) -> GELU -> Linear(4D,D) -> +res ---
        x2 = x3.reshape(mb * T, D)
        xn2 = _layernorm(x2, pat_g, pat_b)
        h = jnp.dot(xn2.astype(jnp.bfloat16), w1_ref[...],
                    preferred_element_type=jnp.float32) + b1
        h = _gelu(h)
        ff = jnp.dot(h.astype(jnp.bfloat16), w2_ref[...],
                     preferred_element_type=jnp.float32) + b2
        x2 = ff + x2

        o_ref[...] = x2.reshape(mb, T, D).astype(o_ref.dtype)
    return kernel


def mixer_stack(x, bp, *, n_enc, split_i, batch_block=None):
    """Apply all stacked MixerBlocks (encoder + decoder) in one pallas_call.

    x: (B, T, D) float32. bp: dict of layer-stacked weights (leading axis = n_layers).
    At layer index n_enc the sequence tail (>= split_i) is zeroed before the layer.
    """
    B, T, D = x.shape
    L, _, Dh = bp["w1"].shape
    PR = bp["vecs"].shape[1]
    mb = batch_block if batch_block is not None else B
    assert B % mb == 0
    nb = B // mb

    kernel = _make_stack_kernel(n_enc=n_enc, split_i=split_i, mb=mb, T=T, D=D, Dh=Dh)

    w_bytes_per_layer = T * T * 2 + PR * Dh * 4 + D * Dh * 2 + Dh * D * 2
    cost = pl.CostEstimate(
        flops=int(2 * L * B * (T * T * D + 2 * T * D * Dh)),
        transcendentals=int(L * B * T * Dh),
        bytes_accessed=int(nb * L * w_bytes_per_layer + 2 * B * T * D * 4))

    return pl.pallas_call(
        kernel,
        out_shape=jax.ShapeDtypeStruct((B, T, D), x.dtype),
        grid=(nb, L),
        in_specs=[
            pl.BlockSpec((mb, T, D), lambda ib, l: (ib, 0, 0)),   # activation (fetched once/ib)
            pl.BlockSpec((None, T, T), lambda ib, l: (l, 0, 0)),  # causal conv weight (bf16)
            pl.BlockSpec((None, PR, Dh), lambda ib, l: (l, 0, 0)),  # packed small vectors (1 DMA)
            pl.BlockSpec((None, D, Dh), lambda ib, l: (l, 0, 0)),   # FF linear 1 weight (bf16)
            pl.BlockSpec((None, Dh, D), lambda ib, l: (l, 0, 0)),   # FF linear 2 weight (bf16)
        ],
        # Output block index constant across the layer axis => activation resident in VMEM.
        out_specs=pl.BlockSpec((mb, T, D), lambda ib, l: (ib, 0, 0)),
        compiler_params=_compiler_params(("parallel", "arbitrary")),
        cost_estimate=cost,
    )(x, bp["conv_w"], bp["vecs"], bp["w1"], bp["w2"])


# ----------------------------- lm_head + cross-entropy kernel (tail only, V-tiled) --------------

def _make_head_kernel(*, mb, tt, tv, D):
    def kernel(x_ref, wt_ref, lab_ref, logits_ref, nll_ref, xb_sc, m_sc, l_sc, g_sc):
        iv = pl.program_id(1)
        nv = pl.num_programs(1)

        @pl.when(iv == 0)
        def _init():
            m_sc[...] = jnp.full(m_sc.shape, -jnp.inf, dtype=m_sc.dtype)
            l_sc[...] = jnp.zeros(l_sc.shape, dtype=l_sc.dtype)
            g_sc[...] = jnp.zeros(g_sc.shape, dtype=g_sc.dtype)
            # hoist the f32 -> bf16 activation cast: done once, reused for every vocab tile
            xb_sc[...] = x_ref[...].reshape(mb * tt, D).astype(jnp.bfloat16)

        s = jnp.dot(xb_sc[...], wt_ref[...], preferred_element_type=jnp.float32)  # (mb*tt, tv)

        # Lane-dense store: logits block is (mb, tt, tv) with tv (multiple of 128) as last dim.
        logits_ref[...] = s.reshape(mb, tt, tv)

        # label-logit accumulation for this vocab tile (shift labels instead of the iota)
        labels = lab_ref[...].reshape(mb * tt, 1) - iv * tv
        cols = jax.lax.broadcasted_iota(jnp.int32, (mb * tt, tv), 1)
        g_sc[...] += jnp.sum(jnp.where(cols == labels, s, 0.0), axis=-1, keepdims=True)

        # online log-sum-exp across vocab tiles
        m_prev = m_sc[...]
        m_new = jnp.maximum(m_prev, jnp.max(s, axis=-1, keepdims=True))
        alpha = jnp.exp(m_prev - m_new)
        l_sc[...] = alpha * l_sc[...] + jnp.sum(jnp.exp(s - m_new), axis=-1, keepdims=True)
        m_sc[...] = m_new

        @pl.when(iv == nv - 1)
        def _finish():
            nll = m_sc[...] + jnp.log(l_sc[...]) - g_sc[...]             # (mb*tt, 1)
            nll_ref[...] = nll.reshape(mb, tt, 1)
    return kernel


def lm_head_loss(x, w_head_t, labels, split_i, *, batch_block=None, v_block=None):
    """lm_head + per-token NLL on tail positions only.

    x: (B, T, D) f32, w_head_t: (D, V) bf16, labels: (B, T) int.
    Returns logits (B, T-split, V) f32 (lane-dense kernel layout) and nll (B, T-split, 1) f32.
    """
    B, T, D = x.shape
    V = w_head_t.shape[1]
    Tt = T - split_i
    mb = batch_block if batch_block is not None else B
    assert B % mb == 0
    nb = B // mb
    tv = v_block if v_block is not None else min(V, 512)
    assert V % tv == 0 and tv % 128 == 0
    nv = V // tv

    labels3 = labels.astype(jnp.int32)[..., None]                 # (B, T, 1)
    if split_i % Tt == 0:
        # read the tail block straight out of the full arrays (no glue slice / HBM copy)
        x_in, lab_in, t_blk = x, labels3, split_i // Tt
    else:
        x_in, lab_in, t_blk = x[:, split_i:, :], labels3[:, split_i:, :], 0

    kernel = _make_head_kernel(mb=mb, tt=Tt, tv=tv, D=D)

    cost = pl.CostEstimate(
        flops=int(2 * B * Tt * D * V),
        transcendentals=int(B * Tt * V),
        bytes_accessed=int(B * Tt * D * 4 + nb * D * V * 2 + B * Tt * V * 4 + 2 * B * Tt * 4))

    return pl.pallas_call(
        kernel,
        out_shape=(jax.ShapeDtypeStruct((B, Tt, V), jnp.float32),   # logits (lane-dense layout)
                   jax.ShapeDtypeStruct((B, Tt, 1), jnp.float32)),  # per-token nll
        grid=(nb, nv),   # nv must stay the innermost ("arbitrary") axis for the resident nll block
        in_specs=[
            pl.BlockSpec((mb, Tt, D), lambda ib, iv: (ib, t_blk, 0)),
            pl.BlockSpec((D, tv), lambda ib, iv: (0, iv)),
            pl.BlockSpec((mb, Tt, 1), lambda ib, iv: (ib, t_blk, 0)),
        ],
        out_specs=(pl.BlockSpec((mb, Tt, tv), lambda ib, iv: (ib, 0, iv)),
                   pl.BlockSpec((mb, Tt, 1), lambda ib, iv: (ib, 0, 0))),
        scratch_shapes=[pltpu.VMEM((mb * Tt, D), jnp.bfloat16),     # hoisted bf16 activations
                        pltpu.VMEM((mb * Tt, 1), jnp.float32),      # running max
                        pltpu.VMEM((mb * Tt, 1), jnp.float32),      # running sum-exp
                        pltpu.VMEM((mb * Tt, 1), jnp.float32)],     # label logit
        compiler_params=_compiler_params(("parallel", "arbitrary")),
        cost_estimate=cost,
    )(x_in, w_head_t, lab_in)


# ----------------------------- full forward (glue) ----------------------------------------------

def autoencoding_mixer_forward(params, input_ids, labels, split_i, n_enc,
                               *, batch_block=None, v_block=None):
    # TODO(synk): embedding gather (wte[input_ids]) stays in XLA glue; a Pallas version needs a
    # manual DMA-gather kernel.
    x = jnp.take(params["wte"], input_ids, axis=0)                       # (B, T, D) f32
    x = mixer_stack(x, params["blocks"], n_enc=n_enc, split_i=split_i,
                    batch_block=batch_block)
    logits_btv, nll = lm_head_loss(x, params["head_wt"], labels, split_i,
                                   batch_block=batch_block, v_block=v_block)
    # CrossEntropyLoss(mean) over the tail positions only
    loss = jnp.mean(nll[..., 0])
    # one-time XLA transpose to the final rearranged layout (kernel store stays lane-dense)
    return loss, jnp.transpose(logits_btv, (0, 2, 1))                    # (B, V, T - split)


# ----------------------------- pure-JAX reference (for a sanity check) --------------------------

def _unpack_vecs(vecs, dim, length):
    return dict(seq_g=vecs[:, 0, :dim], seq_b=vecs[:, 1, :dim],
                pat_g=vecs[:, 2, :dim], pat_b=vecs[:, 3, :dim],
                b1=vecs[:, 4, :], b2=vecs[:, 5, :dim],
                conv_b=vecs[:, 8:8 + length, 0])


def reference_forward(params, input_ids, labels, split_i, n_enc):
    bp = params["blocks"]
    L, D, _ = bp["w1"].shape
    T = bp["conv_w"].shape[1]
    v = _unpack_vecs(bp["vecs"], D, T)
    x = jnp.take(params["wte"], input_ids, axis=0)
    for l in range(L):
        if l == n_enc:
            x = x.at[:, split_i:, :].set(0.0)
        xn = _layernorm(x, v["seq_g"][l], v["seq_b"][l])
        mixed = jnp.einsum("tk,bkd->btd", bp["conv_w"][l], xn.astype(jnp.bfloat16),
                           preferred_element_type=jnp.float32) + v["conv_b"][l][None, :, None]
        x = mixed + x
        xn2 = _layernorm(x, v["pat_g"][l], v["pat_b"][l])
        h = jnp.einsum("btd,dh->bth", xn2.astype(jnp.bfloat16), bp["w1"][l],
                       preferred_element_type=jnp.float32) + v["b1"][l]
        h = _gelu(h)
        ff = jnp.einsum("bth,hd->btd", h.astype(jnp.bfloat16), bp["w2"][l],
                        preferred_element_type=jnp.float32) + v["b2"][l]
        x = ff + x
    xt = x[:, split_i:, :]
    logits = jnp.einsum("btd,dv->btv", xt.astype(jnp.bfloat16), params["head_wt"],
                        preferred_element_type=jnp.float32)
    m = jnp.max(logits, axis=-1, keepdims=True)
    lse = m + jnp.log(jnp.sum(jnp.exp(logits - m), axis=-1, keepdims=True))
    lab = jnp.take_along_axis(logits, labels[:, split_i:, None].astype(jnp.int32), axis=-1)
    loss = jnp.mean(lse - lab)
    return loss, jnp.transpose(logits, (0, 2, 1))


# ----------------------------- deterministic parameter init -------------------------------------

def init_params(key, n_vocab, dim, depth, length):
    n_layers = 2 * depth
    inner = dim * 4
    pr = 8 + ((length + 7) // 8) * 8   # rows 0..5: small vectors; rows 8..8+T-1 col 0: conv bias
    k_emb, k_head, k_blocks = jax.random.split(key, 3)
    bkeys = jax.random.split(k_blocks, n_layers)
    conv_w, conv_b, w1, b1, w2, b2 = [], [], [], [], [], []
    for i in range(n_layers):
        k = jax.random.split(bkeys[i], 6)
        cw = jnp.tril(jax.random.normal(k[0], (length, length), jnp.float32) / math.sqrt(length))
        conv_w.append(cw)  # torch forward masks conv.weight with tril every call
        conv_b.append(jax.random.normal(k[1], (length,), jnp.float32) * 0.02)
        w1.append(jax.random.normal(k[2], (dim, inner), jnp.float32) / math.sqrt(dim))
        b1.append(jax.random.normal(k[3], (inner,), jnp.float32) * 0.02)
        w2.append(jax.random.normal(k[4], (inner, dim), jnp.float32) / math.sqrt(inner))
        b2.append(jax.random.normal(k[5], (dim,), jnp.float32) * 0.02)
    conv_w = jnp.stack(conv_w)
    conv_b = jnp.stack(conv_b)                       # (L, T)
    w1, b1 = jnp.stack(w1), jnp.stack(b1)
    w2, b2 = jnp.stack(w2), jnp.stack(b2)

    # Pack the 7 small per-layer vectors into ONE (L, pr, inner) array -> one DMA per layer step.
    vecs = jnp.zeros((n_layers, pr, inner), jnp.float32)
    vecs = vecs.at[:, 0, :dim].set(jnp.ones((n_layers, dim), jnp.float32))    # seq LN gamma
    vecs = vecs.at[:, 1, :dim].set(jnp.zeros((n_layers, dim), jnp.float32))   # seq LN beta
    vecs = vecs.at[:, 2, :dim].set(jnp.ones((n_layers, dim), jnp.float32))    # patch LN gamma
    vecs = vecs.at[:, 3, :dim].set(jnp.zeros((n_layers, dim), jnp.float32))   # patch LN beta
    vecs = vecs.at[:, 4, :].set(b1)                                           # FF bias 1
    vecs = vecs.at[:, 5, :dim].set(b2)                                        # FF bias 2
    vecs = vecs.at[:, 8:8 + length, 0].set(conv_b)                            # conv bias

    blocks = dict(
        conv_w=conv_w.astype(jnp.bfloat16),          # bf16 MXU operands, f32 accumulation
        vecs=vecs,
        w1=w1.astype(jnp.bfloat16),
        w2=w2.astype(jnp.bfloat16),
    )
    return dict(
        wte=jax.random.normal(k_emb, (n_vocab, dim), jnp.float32) * 0.02,
        head_wt=(jax.random.normal(k_head, (dim, n_vocab), jnp.float32)
                 / math.sqrt(dim)).astype(jnp.bfloat16),
        blocks=blocks,
    )


# ----------------------------- main --------------------------------------------------------------

if __name__ == "__main__":
    B, T, D, V, DEPTH = 4, 16, 128, 256, 2
    SPLIT = T // 2

    key = jax.random.PRNGKey(0)
    k_p, k_ids, k_lab = jax.random.split(key, 3)
    params = init_params(k_p, n_vocab=V, dim=D, depth=DEPTH, length=T)
    input_ids = jax.random.randint(k_ids, (B, T), 0, V, dtype=jnp.int32)
    labels = jax.random.randint(k_lab, (B, T), 0, V, dtype=jnp.int32)

    mb = _pick_batch_block(B)   # mb = B on single-TC v5e/v6e (nb=1); mb = B//2 on v7x (nb=2)
    loss, output = autoencoding_mixer_forward(params, input_ids, labels, SPLIT, DEPTH,
                                              batch_block=mb, v_block=min(V, 512))
    jax.block_until_ready((loss, output))

    assert output.shape == (B, V, T - SPLIT), output.shape
    assert loss.shape == (), loss.shape
    assert bool(jnp.isfinite(loss)), "loss is not finite"

    # sanity check against a pure-JAX reference (same tanh-GELU / bf16-operand math)
    loss_ref, out_ref = reference_forward(params, input_ids, labels, SPLIT, DEPTH)
    assert bool(jnp.allclose(output, out_ref, atol=5e-2, rtol=5e-2)), \
        float(jnp.max(jnp.abs(output - out_ref)))
    assert abs(float(loss) - float(loss_ref)) < 5e-2, (float(loss), float(loss_ref))

    print("KERNEL_OK")
</pallas_src>

<mosaic_0001>
module attributes {stable_mosaic.version = 11 : i64} {
  func.func @kernel(%arg0: i32, %arg1: i32, %arg2: memref<4x16x128xf32, #tpu.memory_space<vmem>>, %arg3: memref<1x16x16xbf16, #tpu.memory_space<vmem>>, %arg4: memref<1x24x512xf32, #tpu.memory_space<vmem>>, %arg5: memref<1x128x512xbf16, #tpu.memory_space<vmem>>, %arg6: memref<1x512x128xbf16, #tpu.memory_space<vmem>>, %arg7: memref<4x16x128xf32, #tpu.memory_space<vmem>>) attributes {dimension_semantics = [#tpu.dimension_semantics<parallel>, #tpu.dimension_semantics<arbitrary>], iteration_bounds = array<i64: 1, 4>, scalar_prefetch = 0 : i64, scratch_operands = 0 : i64, tpu.core_type = #tpu.core_type<tc>, window_params = [{transform_indices = @transform_0, window_bounds = array<i64: 4, 16, 128>}, {transform_indices = @transform_1, window_bounds = array<i64: 1, 16, 16>}, {transform_indices = @transform_2, window_bounds = array<i64: 1, 24, 512>}, {transform_indices = @transform_3, window_bounds = array<i64: 1, 128, 512>}, {transform_indices = @transform_4, window_bounds = array<i64: 1, 512, 128>}, {transform_indices = @transform_5, window_bounds = array<i64: 4, 16, 128>}]} {
    %c0_i32 = arith.constant 0 : i32
    %0 = arith.cmpi eq, %arg1, %c0_i32 : i32
    %1 = arith.extui %0 : i1 to i32
    %c0_i32_0 = arith.constant 0 : i32
    %2 = arith.cmpi ne, %1, %c0_i32_0 : i32
    scf.if %2 {
      %c0_47 = arith.constant 0 : index
      %c0_48 = arith.constant 0 : index
      %c0_49 = arith.constant 0 : index
      %106 = vector.load %arg2[%c0_47, %c0_48, %c0_49] : memref<4x16x128xf32, #tpu.memory_space<vmem>>, vector<4x16x128xf32>
      %c0_50 = arith.constant 0 : index
      %c0_51 = arith.constant 0 : index
      %c0_52 = arith.constant 0 : index
      %107 = vector.load %arg7[%c0_50, %c0_51, %c0_52] : memref<4x16x128xf32, #tpu.memory_space<vmem>>, vector<4x16x128xf32>
      tpu.vector_store %arg7[%c0_50, %c0_51, %c0_52], %106 {strides = array<i32>} : memref<4x16x128xf32, #tpu.memory_space<vmem>>, vector<4x16x128xf32>,
    } else {
    }
    %c2_i32 = arith.constant 2 : i32
    %3 = arith.cmpi eq, %arg1, %c2_i32 : i32
    %4 = arith.extui %3 : i1 to i32
    %c0_i32_1 = arith.constant 0 : i32
    %5 = arith.cmpi ne, %4, %c0_i32_1 : i32
    scf.if %5 {
      %106 = tpu.iota {dimensions = array<i32: 1>} : vector<4x16x128xi32>
      %c8_i32 = arith.constant 8 : i32
      %107 = vector.broadcast %c8_i32 : i32 to vector<4x16x128xi32>
      %108 = arith.cmpi slt, %106, %107 : vector<4x16x128xi32>
      %c0_47 = arith.constant 0 : index
      %c0_48 = arith.constant 0 : index
      %c0_49 = arith.constant 0 : index
      %109 = vector.load %arg7[%c0_47, %c0_48, %c0_49] : memref<4x16x128xf32, #tpu.memory_space<vmem>>, vector<4x16x128xf32>
      %cst_50 = arith.constant 0.000000e+00 : f32
      %110 = vector.broadcast %cst_50 : f32 to vector<4x16x128xf32>
      %111 = arith.select %108, %109, %110 : vector<4x16x128xi1>, vector<4x16x128xf32>
      %c0_51 = arith.constant 0 : index
      %c0_52 = arith.constant 0 : index
      %c0_53 = arith.constant 0 : index
      %112 = vector.load %arg7[%c0_51, %c0_52, %c0_53] : memref<4x16x128xf32, #tpu.memory_space<vmem>>, vector<4x16x128xf32>
      tpu.vector_store %arg7[%c0_51, %c0_52, %c0_53], %111 {strides = array<i32>} : memref<4x16x128xf32, #tpu.memory_space<vmem>>, vector<4x16x128xf32>,
    } else {
    }
    %c0 = arith.constant 0 : index
    %c0_2 = arith.constant 0 : index
    %c0_3 = arith.constant 0 : index
    %6 = vector.load %arg4[%c0, %c0_2, %c0_3] : memref<1x24x512xf32, #tpu.memory_space<vmem>>, vector<1x1x128xf32>
    %7 = vector.shape_cast %6 : vector<1x1x128xf32> to vector<1x128xf32>
    %c0_4 = arith.constant 0 : index
    %c1 = arith.constant 1 : index
    %c0_5 = arith.constant 0 : index
    %8 = vector.load %arg4[%c0_4, %c1, %c0_5] : memref<1x24x512xf32, #tpu.memory_space<vmem>>, vector<1x1x128xf32>
    %9 = vector.shape_cast %8 : vector<1x1x128xf32> to vector<1x128xf32>
    %c0_6 = arith.constant 0 : index
    %c2 = arith.constant 2 : index
    %c0_7 = arith.constant 0 : index
    %10 = vector.load %arg4[%c0_6, %c2, %c0_7] : memref<1x24x512xf32, #tpu.memory_space<vmem>>, vector<1x1x128xf32>
    %11 = vector.shape_cast %10 : vector<1x1x128xf32> to vector<1x128xf32>
    %c0_8 = arith.constant 0 : index
    %c3 = arith.constant 3 : index
    %c0_9 = arith.constant 0 : index
    %12 = vector.load %arg4[%c0_8, %c3, %c0_9] : memref<1x24x512xf32, #tpu.memory_space<vmem>>, vector<1x1x128xf32>
    %13 = vector.shape_cast %12 : vector<1x1x128xf32> to vector<1x128xf32>
    %c0_10 = arith.constant 0 : index
    %c4 = arith.constant 4 : index
    %c0_11 = arith.constant 0 : index
    %14 = vector.load %arg4[%c0_10, %c4, %c0_11] : memref<1x24x512xf32, #tpu.memory_space<vmem>>, vector<1x1x512xf32>
    %15 = vector.shape_cast %14 : vector<1x1x512xf32> to vector<1x512xf32>
    %c0_12 = arith.constant 0 : index
    %c5 = arith.constant 5 : index
    %c0_13 = arith.constant 0 : index
    %16 = vector.load %arg4[%c0_12, %c5, %c0_13] : memref<1x24x512xf32, #tpu.memory_space<vmem>>, vector<1x1x128xf32>
    %17 = vector.shape_cast %16 : vector<1x1x128xf32> to vector<1x128xf32>
    %c0_14 = arith.constant 0 : index
    %c8 = arith.constant 8 : index
    %c0_15 = arith.constant 0 : index
    %18 = vector.load %arg4[%c0_14, %c8, %c0_15] : memref<1x24x512xf32, #tpu.memory_space<vmem>>, vector<1x16x1xf32>
    %19 = vector.shape_cast %18 : vector<1x16x1xf32> to vector<16x1xf32>
    %c0_16 = arith.constant 0 : index
    %c0_17 = arith.constant 0 : index
    %c0_18 = arith.constant 0 : index
    %20 = vector.load %arg7[%c0_16, %c0_17, %c0_18] : memref<4x16x128xf32, #tpu.memory_space<vmem>>, vector<4x16x128xf32>
    %cst = arith.constant dense<0.000000e+00> : vector<4x16xf32>
    %21 = vector.multi_reduction <add>, %20, %cst [2] : vector<4x16x128xf32> to vector<4x16xf32>
    %22 = vector.shape_cast %21 : vector<4x16xf32> to vector<4x16x1xf32>
    %cst_19 = arith.constant 1.280000e+02 : f32
    %23 = vector.broadcast %cst_19 : f32 to vector<4x16x1xf32>
    %24 = arith.divf %22, %23 : vector<4x16x1xf32>
    %25 = vector.broadcast %24 : vector<4x16x1xf32> to vector<4x16x128xf32>
    %26 = arith.subf %20, %25 : vector<4x16x128xf32>
    %27 = arith.mulf %26, %26 : vector<4x16x128xf32>
    %cst_20 = arith.constant dense<0.000000e+00> : vector<4x16xf32>
    %28 = vector.multi_reduction <add>, %27, %cst_20 [2] : vector<4x16x128xf32> to vector<4x16xf32>
    %29 = vector.shape_cast %28 : vector<4x16xf32> to vector<4x16x1xf32>
    %cst_21 = arith.constant 1.280000e+02 : f32
    %30 = vector.broadcast %cst_21 : f32 to vector<4x16x1xf32>
    %31 = arith.divf %29, %30 : vector<4x16x1xf32>
    %32 = vector.broadcast %24 : vector<4x16x1xf32> to vector<4x16x128xf32>
    %33 = arith.subf %20, %32 : vector<4x16x128xf32>
    %cst_22 = arith.constant 9.99999974E-6 : f32
    %34 = vector.broadcast %cst_22 : f32 to vector<4x16x1xf32>
    %35 = arith.addf %31, %34 : vector<4x16x1xf32>
    %36 = math.rsqrt %35 : vector<4x16x1xf32>
    %37 = vector.broadcast %36 : vector<4x16x1xf32> to vector<4x16x128xf32>
    %38 = arith.mulf %33, %37 : vector<4x16x128xf32>
    %39 = vector.shape_cast %7 : vector<1x128xf32> to vector<1x1x128xf32>
    %40 = vector.broadcast %39 : vector<1x1x128xf32> to vector<4x16x128xf32>
    %41 = arith.mulf %38, %40 : vector<4x16x128xf32>
    %42 = vector.shape_cast %9 : vector<1x128xf32> to vector<1x1x128xf32>
    %43 = vector.broadcast %42 : vector<1x1x128xf32> to vector<4x16x128xf32>
    %44 = arith.addf %41, %43 : vector<4x16x128xf32>
    %c0_23 = arith.constant 0 : index
    %c0_24 = arith.constant 0 : index
    %c0_25 = arith.constant 0 : index
    %45 = vector.load %arg3[%c0_23, %c0_24, %c0_25] : memref<1x16x16xbf16, #tpu.memory_space<vmem>>, vector<1x16x16xbf16>
    %46 = vector.shape_cast %45 : vector<1x16x16xbf16> to vector<16x16xbf16>
    %47 = vector.shape_cast %46 : vector<16x16xbf16> to vector<1x16x16xbf16>
    %48 = vector.broadcast %47 : vector<1x16x16xbf16> to vector<4x16x16xbf16>
    %49 = arith.truncf %44 : vector<4x16x128xf32> to vector<4x16x128xbf16>
    "tpu.trace_start"() <{level = 10 : i32, message = "mtk,mkd->mtd"}> : () -> ()
    %cst_26 = arith.constant dense<0.000000e+00> : vector<4x16x128xf32>
    %50 = tpu.matmul %48, %49, %cst_26 {dimension_numbers = #tpu.dot_dimension_numbers<[2], [1], [1], [2], [0, 0, 0, 1, 1, 2], [0], [0]>} : vector<4x16x16xbf16>, vector<4x16x128xbf16>, vector<4x16x128xf32> -> vector<4x16x128xf32>
    "tpu.trace_stop"() : () -> ()
    %51 = vector.shape_cast %19 : vector<16x1xf32> to vector<1x16x1xf32>
    %52 = vector.broadcast %51 : vector<1x16x1xf32> to vector<4x16x128xf32>
    %53 = arith.addf %50, %52 : vector<4x16x128xf32>
    %54 = arith.addf %53, %20 : vector<4x16x128xf32>
    %55 = vector.shape_cast %54 : vector<4x16x128xf32> to vector<64x128xf32>
    %cst_27 = arith.constant dense<0.000000e+00> : vector<64xf32>
    %56 = vector.multi_reduction <add>, %55, %cst_27 [1] : vector<64x128xf32> to vector<64xf32>
    %57 = vector.shape_cast %56 : vector<64xf32> to vector<64x1xf32>
    %cst_28 = arith.constant 1.280000e+02 : f32
    %58 = vector.broadcast %cst_28 : f32 to vector<64x1xf32>
    %59 = arith.divf %57, %58 : vector<64x1xf32>
    %60 = vector.broadcast %59 : vector<64x1xf32> to vector<64x128xf32>
    %61 = arith.subf %55, %60 : vector<64x128xf32>
    %62 = arith.mulf %61, %61 : vector<64x128xf32>
    %cst_29 = arith.constant dense<0.000000e+00> : vector<64xf32>
    %63 = vector.multi_reduction <add>, %62, %cst_29 [1] : vector<64x128xf32> to vector<64xf32>
    %64 = vector.shape_cast %63 : vector<64xf32> to vector<64x1xf32>
    %cst_30 = arith.constant 1.280000e+02 : f32
    %65 = vector.broadcast %cst_30 : f32 to vector<64x1xf32>
    %66 = arith.divf %64, %65 : vector<64x1xf32>
    %67 = vector.broadcast %59 : vector<64x1xf32> to vector<64x128xf32>
    %68 = arith.subf %55, %67 : vector<64x128xf32>
    %cst_31 = arith.constant 9.99999974E-6 : f32
    %69 = vector.broadcast %cst_31 : f32 to vector<64x1xf32>
    %70 = arith.addf %66, %69 : vector<64x1xf32>
    %71 = math.rsqrt %70 : vector<64x1xf32>
    %72 = vector.broadcast %71 : vector<64x1xf32> to vector<64x128xf32>
    %73 = arith.mulf %68, %72 : vector<64x128xf32>
    %74 = vector.broadcast %11 : vector<1x128xf32> to vector<64x128xf32>
    %75 = arith.mulf %73, %74 : vector<64x128xf32>
    %76 = vector.broadcast %13 : vector<1x128xf32> to vector<64x128xf32>
    %77 = arith.addf %75, %76 : vector<64x128xf32>
    %78 = arith.truncf %77 : vector<64x128xf32> to vector<64x128xbf16>
    %c0_32 = arith.constant 0 : index
    %c0_33 = arith.constant 0 : index
    %c0_34 = arith.constant 0 : index
    %79 = vector.load %arg5[%c0_32, %c0_33, %c0_34] : memref<1x128x512xbf16, #tpu.memory_space<vmem>>, vector<1x128x512xbf16>
    %80 = vector.shape_cast %79 : vector<1x128x512xbf16> to vector<128x512xbf16>
    %cst_35 = arith.constant dense<0.000000e+00> : vector<64x512xf32>
    %81 = tpu.matmul %78, %80, %cst_35 {dimension_numbers = #tpu.dot_dimension_numbers<[1], [0], [0], [1], [0, 0, 1, 1], [], []>} : vector<64x128xbf16>, vector<128x512xbf16>, vector<64x512xf32> -> vector<64x512xf32>
    %82 = vector.broadcast %15 : vector<1x512xf32> to vector<64x512xf32>
    %83 = arith.addf %81, %82 : vector<64x512xf32>
    %cst_36 = arith.constant 5.000000e-01 : f32
    %84 = vector.broadcast %cst_36 : f32 to vector<64x512xf32>
    %85 = arith.mulf %84, %83 : vector<64x512xf32>
    %cst_37 = arith.constant 4.471500e-02 : f32
    %86 = vector.broadcast %cst_37 : f32 to vector<64x512xf32>
    %87 = arith.mulf %86, %83 : vector<64x512xf32>
    %88 = arith.mulf %87, %83 : vector<64x512xf32>
    %89 = arith.mulf %88, %83 : vector<64x512xf32>
    %90 = arith.addf %83, %89 : vector<64x512xf32>
    %cst_38 = arith.constant 0.797884583 : f32
    %91 = vector.broadcast %cst_38 : f32 to vector<64x512xf32>
    %92 = arith.mulf %91, %90 : vector<64x512xf32>
    %93 = math.tanh %92 : vector<64x512xf32>
    %cst_39 = arith.constant 1.000000e+00 : f32
    %94 = vector.broadcast %cst_39 : f32 to vector<64x512xf32>
    %95 = arith.addf %94, %93 : vector<64x512xf32>
    %96 = arith.mulf %85, %95 : vector<64x512xf32>
    %97 = arith.truncf %96 : vector<64x512xf32> to vector<64x512xbf16>
    %c0_40 = arith.constant 0 : index
    %c0_41 = arith.constant 0 : index
    %c0_42 = arith.constant 0 : index
    %98 = vector.load %arg6[%c0_40, %c0_41, %c0_42] : memref<1x512x128xbf16, #tpu.memory_space<vmem>>, vector<1x512x128xbf16>
    %99 = vector.shape_cast %98 : vector<1x512x128xbf16> to vector<512x128xbf16>
    %cst_43 = arith.constant dense<0.000000e+00> : vector<64x128xf32>
    %100 = tpu.matmul %97, %99, %cst_43 {dimension_numbers = #tpu.dot_dimension_numbers<[1], [0], [0], [1], [0, 0, 1, 1], [], []>} : vector<64x512xbf16>, vector<512x128xbf16>, vector<64x128xf32> -> vector<64x128xf32>
    %101 = vector.broadcast %17 : vector<1x128xf32> to vector<64x128xf32>
    %102 = arith.addf %100, %101 : vector<64x128xf32>
    %103 = arith.addf %102, %55 : vector<64x128xf32>
    %104 = vector.shape_cast %103 : vector<64x128xf32> to vector<4x16x128xf32>
    %c0_44 = arith.constant 0 : index
    %c0_45 = arith.constant 0 : index
    %c0_46 = arith.constant 0 : index
    %105 = vector.load %arg7[%c0_44, %c0_45, %c0_46] : memref<4x16x128xf32, #tpu.memory_space<vmem>>, vector<4x16x128xf32>
    tpu.vector_store %arg7[%c0_44, %c0_45, %c0_46], %104 {strides = array<i32>} : memref<4x16x128xf32, #tpu.memory_space<vmem>>, vector<4x16x128xf32>,
    return
  }
  func.func @transform_0(%arg0: i32, %arg1: i32) -> (i32, i32, i32) {
    %c0_i32 = arith.constant 0 : i32
    %c0_i32_0 = arith.constant 0 : i32
    %c0_i32_1 = arith.constant 0 : i32
    return %arg0, %c0_i32, %c0_i32_0 : i32, i32, i32
  }
  func.func @transform_1(%arg0: i32, %arg1: i32) -> (i32, i32, i32) {
    %c0_i32 = arith.constant 0 : i32
    %c0_i32_0 = arith.constant 0 : i32
    %c0_i32_1 = arith.constant 0 : i32
    return %arg1, %c0_i32, %c0_i32_0 : i32, i32, i32
  }
  func.func @transform_2(%arg0: i32, %arg1: i32) -> (i32, i32, i32) {
    %c0_i32 = arith.constant 0 : i32
    %c0_i32_0 = arith.constant 0 : i32
    %c0_i32_1 = arith.constant 0 : i32
    return %arg1, %c0_i32, %c0_i32_0 : i32, i32, i32
  }
  func.func @transform_3(%arg0: i32, %arg1: i32) -> (i32, i32, i32) {
    %c0_i32 = arith.constant 0 : i32
    %c0_i32_0 = arith.constant 0 : i32
    %c0_i32_1 = arith.constant 0 : i32
    return %arg1, %c0_i32, %c0_i32_0 : i32, i32, i32
  }
  func.func @transform_4(%arg0: i32, %arg1: i32) -> (i32, i32, i32) {
    %c0_i32 = arith.constant 0 : i32
    %c0_i32_0 = arith.constant 0 : i32
    %c0_i32_1 = arith.constant 0 : i32
    return %arg1, %c0_i32, %c0_i32_0 : i32, i32, i32
  }
  func.func @transform_5(%arg0: i32, %arg1: i32) -> (i32, i32, i32) {
    %c0_i32 = arith.constant 0 : i32
    %c0_i32_0 = arith.constant 0 : i32
    %c0_i32_1 = arith.constant 0 : i32
    return %arg0, %c0_i32, %c0_i32_0 : i32, i32, i32
  }
}

</mosaic_0001>

<llo_original>
// kernel: tpu_custom_call.1
$region0: #{tpu_custom_call.1}
  #allocation0 [shape = 'u32[]', space=smem, size = 0x4, offset = 0x4, fixed_abs, tag = 'smem constant byte address 0x4 - core index']
  #allocation1 [shape = 'u32[144,128]{1,0:T(1,128)}', space=vmem, size = 0x12000, scoped, tag = 'internal scratch']
  %s0 = inlined_call_operand.hbm [shape: f32[4,16,128], index: 0, kind: input, shape index: {}]
  %s1 = inlined_call_operand.hbm [shape: bf16[4,16,16], index: 1, kind: input, shape index: {}]
  %s2 = inlined_call_operand.hbm [shape: f32[4,24,512], index: 2, kind: input, shape index: {}]
  %s3 = inlined_call_operand.hbm [shape: bf16[4,128,512], index: 3, kind: input, shape index: {}]
  %s4 = inlined_call_operand.hbm [shape: bf16[4,512,128], index: 4, kind: input, shape index: {}]
  %s5 = inlined_call_operand.hbm [shape: f32[4,16,128], index: 5, kind: output, shape index: {}]
  %s6 = sld [smem:[#allocation0]]
  $region81: #{tpu_custom_call.1} parent=0
    _
  %s8 = ssub.s32 1, %s6
  %s9 = scalar_select 0, %s8, %s6
  $region1: #{tpu_custom_call.1} parent=0
    #allocation2 [shape = 'u8[32768]{0}', space=vmem, size = 0x8000, scoped, tag = 'input window, operand 0, single buffered']
    #allocation3 [shape = 's32[2]{0}', space=sflag, size = 0x8, scoped, tag = 'scoped memory for tpu_custom_call.1']
    #allocation4 [shape = 's32[2]{0}', space=sflag, size = 0x8, scoped, tag = 'scoped memory for tpu_custom_call.1']
    #allocation5 [shape = 'u8[8192]{0}', space=vmem, size = 0x2000, scoped, tag = 'input window, operand 1']
    #allocation6 [shape = 's32[2]{0}', space=sflag, size = 0x8, scoped, tag = 'scoped memory for tpu_custom_call.1']
    #allocation7 [shape = 'u8[98304]{0}', space=vmem, size = 0x18000, scoped, tag = 'input window, operand 2']
    #allocation8 [shape = 'u8[262144]{0}', space=vmem, size = 0x40000, scoped, tag = 'input window, operand 3']
    #allocation9 [shape = 's32[2]{0}', space=sflag, size = 0x8, scoped, tag = 'scoped memory for tpu_custom_call.1']
    #allocation10 [shape = 'u8[262144]{0}', space=vmem, size = 0x40000, scoped, tag = 'input window, operand 4']
    #allocation11 [shape = 'u8[32768]{0}', space=vmem, size = 0x8000, scoped, tag = 'output window, operand 0, single buffered']
    %10 = vsyncpa [#allocation3], 0
    %11 = vsyncpa [#allocation6], 0
    %s12 = scalar_lea.sflag [#allocation6], 1
    %13 = vsyncpa %s12, 0
    %14 = vsyncpa [#allocation9], 0
    %s15 = scalar_lea.sflag [#allocation9], 1
    %16 = vsyncpa %s15, 0
    %17 = vsyncpa [#allocation4], 0
    loop: start=0, step=1, limit=6
    $region2: #{tpu_custom_call.1} parent=1 // loop_pre_header
      _
    $region3: #{tpu_custom_call.1} parent=1 // loop_header
      %s19 = sphi 0, %s23
      %p20 = scmp.ge.s32.totalorder %s19, 6
      %s26 = sphi 0, %s38
      %s27 = sphi 0, %s34
      %s28 = sphi 0, %s26
      %s29 = sphi 0, %s27
      %s30 = sphi 0, %s28
      %s31 = sphi 0, %s29
      %s41 = sphi 0, %s43
      %s44 = sphi 0, %s41
      %s45 = sphi 0, %s44
      %s61 = sphi 0, %s45
      %s67 = sphi 0, %s69
      %s70 = sphi 0, %s67
      %s71 = sphi 0, %s70
      %s87 = sphi 0, %s71
      %s93 = sphi 0, %s95
      %s96 = sphi 0, %s93
      %s97 = sphi 0, %s96
      %s113 = sphi 0, %s97
      %s119 = sphi 0, %s121
      %s122 = sphi 0, %s119
      %s123 = sphi 0, %s122
      %s139 = sphi 0, %s123
      %s145 = sphi 0, %s147
      %s148 = sphi 0, %s145
      %s149 = sphi 0, %s148
      %s165 = sphi 0, %s149
      %s171 = sphi 0, %s173
      %s174 = sphi 0, %s171
      %s175 = sphi 0, %s174
      %s191 = sphi 0, %s175
    $region4: #{tpu_custom_call.1} parent=1 // loop_header_branch
      %22 = sbr.rel (%p20) target = $region8
    $region5: #{tpu_custom_call.1} parent=1 // loop_body
      %s24 = ssub.s32 %s19, 1
      %s25 = ssub.s32 %s19, 2
      %s32 = sadd.s32 1, %s27
      %p33 = scmp.ge.s32.totalorder %s32, 4
      %s34 = scalar_select %p33, 0, %s32
      %s35 = sadd.s32 1, %s26
      %s36 = scalar_select %p33, %s35, %s26
      %p37 = scmp.ge.s32.totalorder %s36, 1
      %s38 = scalar_select %p37, 0, %s36
      %s39 = ssub.s32 %s26, %s38
      %p40 = scmp.eq.s32.totalorder %s39, 0
      %s42 = sadd.s32 %s41, 1
      %s43 = scalar_select %p40, %s41, %s42
      %p46 = pneg %p40
      %p47 = scmp.eq.s32.totalorder %s19, 3
      %p48 = por %p46, %p47
      %p49 = scmp.ne.s32.totalorder %s41, %s44
      %p50 = scmp.eq.s32.totalorder %s19, 0
      %p51 = por %p49, %p50
      %p52 = scmp.ne.s32.totalorder %s41, %s44
      %p53 = scmp.eq.s32.totalorder %s24, 3
      %p54 = por %p52, %p53
      %p55 = scmp.ne.s32.totalorder %s44, %s45
      %p56 = scmp.eq.s32.totalorder %s24, 0
      %p57 = por %p55, %p56
      %p58 = scmp.ne.s32.totalorder %s44, %s45
      %p59 = scmp.eq.s32.totalorder %s25, 3
      %p60 = por %p58, %p59
      %p62 = scmp.ne.s32.totalorder %s45, %s61
      %p63 = scmp.eq.s32.totalorder %s25, 0
      %p64 = por %p62, %p63
      %s65 = ssub.s32 %s27, %s34
      %p66 = scmp.eq.s32.totalorder %s65, 0
      %s68 = sadd.s32 %s67, 1
      %s69 = scalar_select %p66, %s67, %s68
      %p72 = pneg %p66
      %p73 = scmp.eq.s32.totalorder %s19, 3
      %p74 = por %p72, %p73
      %p75 = scmp.ne.s32.totalorder %s67, %s70
      %p76 = scmp.eq.s32.totalorder %s19, 0
      %p77 = por %p75, %p76
      %p78 = scmp.ne.s32.totalorder %s67, %s70
      %p79 = scmp.eq.s32.totalorder %s24, 3
      %p80 = por %p78, %p79
      %p81 = scmp.ne.s32.totalorder %s70, %s71
      %p82 = scmp.eq.s32.totalorder %s24, 0
      %p83 = por %p81, %p82
      %p84 = scmp.ne.s32.totalorder %s70, %s71
      %p85 = scmp.eq.s32.totalorder %s25, 3
      %p86 = por %p84, %p85
      %p88 = scmp.ne.s32.totalorder %s71, %s87
      %p89 = scmp.eq.s32.totalorder %s25, 0
      %p90 = por %p88, %p89
      %s91 = ssub.s32 %s27, %s34
      %p92 = scmp.eq.s32.totalorder %s91, 0
      %s94 = sadd.s32 %s93, 1
      %s95 = scalar_select %p92, %s93, %s94
      %p98 = pneg %p92
      %p99 = scmp.eq.s32.totalorder %s19, 3
      %p100 = por %p98, %p99
      %p101 = scmp.ne.s32.totalorder %s93, %s96
      %p102 = scmp.eq.s32.totalorder %s19, 0
      %p103 = por %p101, %p102
      %p104 = scmp.ne.s32.totalorder %s93, %s96
      %p105 = scmp.eq.s32.totalorder %s24, 3
      %p106 = por %p104, %p105
      %p107 = scmp.ne.s32.totalorder %s96, %s97
      %p108 = scmp.eq.s32.totalorder %s24, 0
      %p109 = por %p107, %p108
      %p110 = scmp.ne.s32.totalorder %s96, %s97
      %p111 = scmp.eq.s32.totalorder %s25, 3
      %p112 = por %p110, %p111
      %p114 = scmp.ne.s32.totalorder %s97, %s113
      %p115 = scmp.eq.s32.totalorder %s25, 0
      %p116 = por %p114, %p115
      %s117 = ssub.s32 %s27, %s34
      %p118 = scmp.eq.s32.totalorder %s117, 0
      %s120 = sadd.s32 %s119, 1
      %s121 = scalar_select %p118, %s119, %s120
      %p124 = pneg %p118
      %p125 = scmp.eq.s32.totalorder %s19, 3
      %p126 = por %p124, %p125
      %p127 = scmp.ne.s32.totalorder %s119, %s122
      %p128 = scmp.eq.s32.totalorder %s19, 0
      %p129 = por %p127, %p128
      %p130 = scmp.ne.s32.totalorder %s119, %s122
      %p131 = scmp.eq.s32.totalorder %s24, 3
      %p132 = por %p130, %p131
      %p133 = scmp.ne.s32.totalorder %s122, %s123
      %p134 = scmp.eq.s32.totalorder %s24, 0
      %p135 = por %p133, %p134
      %p136 = scmp.ne.s32.totalorder %s122, %s123
      %p137 = scmp.eq.s32.totalorder %s25, 3
      %p138 = por %p136, %p137
      %p140 = scmp.ne.s32.totalorder %s123, %s139
      %p141 = scmp.eq.s32.totalorder %s25, 0
      %p142 = por %p140, %p141
      %s143 = ssub.s32 %s27, %s34
      %p144 = scmp.eq.s32.totalorder %s143, 0
      %s146 = sadd.s32 %s145, 1
      %s147 = scalar_select %p144, %s145, %s146
      %p150 = pneg %p144
      %p151 = scmp.eq.s32.totalorder %s19, 3
      %p152 = por %p150, %p151
      %p153 = scmp.ne.s32.totalorder %s145, %s148
      %p154 = scmp.eq.s32.totalorder %s19, 0
      %p155 = por %p153, %p154
      %p156 = scmp.ne.s32.totalorder %s145, %s148
      %p157 = scmp.eq.s32.totalorder %s24, 3
      %p158 = por %p156, %p157
      %p159 = scmp.ne.s32.totalorder %s148, %s149
      %p160 = scmp.eq.s32.totalorder %s24, 0
      %p161 = por %p159, %p160
      %p162 = scmp.ne.s32.totalorder %s148, %s149
      %p163 = scmp.eq.s32.totalorder %s25, 3
      %p164 = por %p162, %p163
      %p166 = scmp.ne.s32.totalorder %s149, %s165
      %p167 = scmp.eq.s32.totalorder %s25, 0
      %p168 = por %p166, %p167
      %s169 = ssub.s32 %s26, %s38
      %p170 = scmp.eq.s32.totalorder %s169, 0
      %s172 = sadd.s32 %s171, 1
      %s173 = scalar_select %p170, %s171, %s172
      %p176 = pneg %p170
      %p177 = scmp.eq.s32.totalorder %s19, 3
      %p178 = por %p176, %p177
      %p179 = scmp.ne.s32.totalorder %s171, %s174
      %p180 = scmp.eq.s32.totalorder %s19, 0
      %p181 = por %p179, %p180
      %p182 = scmp.ne.s32.totalorder %s171, %s174
      %p183 = scmp.eq.s32.totalorder %s24, 3
      %p184 = por %p182, %p183
      %p185 = scmp.ne.s32.totalorder %s174, %s175
      %p186 = scmp.eq.s32.totalorder %s24, 0
      %p187 = por %p185, %p186
      %p188 = scmp.ne.s32.totalorder %s174, %s175
      %p189 = scmp.eq.s32.totalorder %s25, 3
      %p190 = por %p188, %p189
      %p192 = scmp.ne.s32.totalorder %s175, %s191
      %p193 = scmp.eq.s32.totalorder %s25, 0
      %p194 = por %p192, %p193
      %p195 = scmp.le.s32.totalorder 1, %s19
      %p196 = scmp.lt.s32.totalorder %s19, 5
      %p197 = pnand %p195, %p196
      %p198 = pneg %p197
      // Predicated region
      $region9: #{tpu_custom_call.1} parent=5 // pred_check
        _
      $region10: #{tpu_custom_call.1} parent=5 // pred_check_branch
        %200 = sbr.rel (%p197) target = $region12
      $region11: #{tpu_custom_call.1} parent=5 // pred_region
        %s201 = ssub.s32 %s19, 1
        // Predicated region
        $region13: #{tpu_custom_call.1} parent=11 // pred_check
          %p202 = pneg %p57
        $region14: #{tpu_custom_call.1} parent=11 // pred_check_branch
          %204 = sbr.rel (%p202) target = $region16
        $region15: #{tpu_custom_call.1} parent=11 // pred_region
          %s205 = smul.u32 4, %s28
          %s207 = ssub.s32 1024, 1024
          %208 = vsyncadd [#allocation3], %s207
          %s209 = smul.addr %s205, 2
          %s210 = smul.addr %s209, 128
          %s211 = scalar_lea.hbm %s0, %s210
          %s212 = sshll.u32 [#allocation2], 4
          %s213 = int_to_ptr.vmem [resolvable:$true] %s212
          %218 = dma.hbm_to_vmem [thread:$0]  %s211, 1024, %s213, [#allocation3], 128, 128, 8
        $region16: #{tpu_custom_call.1} parent=11 // pred_fallthru
          _
      $region12: #{tpu_custom_call.1} parent=5 // pred_fallthru
        _
      %p219 = scmp.lt.s32.totalorder %s19, 4
      // Predicated region
      $region17: #{tpu_custom_call.1} parent=5 // pred_check
        %p220 = pneg %p219
      $region18: #{tpu_custom_call.1} parent=5 // pred_check_branch
        %222 = sbr.rel (%p220) target = $region20
      $region19: #{tpu_custom_call.1} parent=5 // pred_region
        // Predicated region
        $region21: #{tpu_custom_call.1} parent=19 // pred_check
          %p223 = pneg %p77
        $region22: #{tpu_custom_call.1} parent=19 // pred_check_branch
          %225 = sbr.rel (%p223) target = $region24
        $region23: #{tpu_custom_call.1} parent=19 // pred_region
          %s226 = sand.u32 %s19, 1
          %s227 = scalar_lea.sflag [#allocation6], %s226
          %s228 = sand.u32 %s67, 1
          %s229 = smul.addr %s228, 8
          %s230 = scalar_lea.vmem [#allocation5], %s229
          %s232 = ssub.s32 128, 128
          %233 = vsyncadd %s227, %s232
          %s234 = smul.addr %s27, 2
          %s235 = smul.addr %s234, 64
          %s236 = scalar_lea.hbm %s1, %s235
          %s237 = sshll.u32 %s230, 4
          %s238 = int_to_ptr.vmem [resolvable:$true] %s237
          %243 = dma.hbm_to_vmem [thread:$0]  %s236, 128, %s238, %s227, 64, 64, 4
        $region24: #{tpu_custom_call.1} parent=19 // pred_fallthru
          _
        // Predicated region
        $region25: #{tpu_custom_call.1} parent=19 // pred_check
          %p244 = pneg %p103
        $region26: #{tpu_custom_call.1} parent=19 // pred_check_branch
          %246 = sbr.rel (%p244) target = $region28
        $region27: #{tpu_custom_call.1} parent=19 // pred_region
          %s247 = sand.u32 %s19, 1
          %s248 = scalar_lea.sflag [#allocation6], %s247
          %s249 = sand.u32 %s93, 1
          %s250 = smul.addr %s249, 96
          %s251 = scalar_lea.vmem [#allocation7], %s250
          %s253 = ssub.s32 1536, 1536
          %254 = vsyncadd %s248, %s253
          %s255 = smul.addr %s27, 12
          %s256 = smul.addr %s255, 128
          %s257 = scalar_lea.hbm %s2, %s256
          %s258 = sshll.u32 %s251, 4
          %s259 = int_to_ptr.vmem [resolvable:$true] %s258
          %264 = dma.hbm_to_vmem [thread:$0]  %s257, 1536, %s259, %s248, 512, 512, 32
        $region28: #{tpu_custom_call.1} parent=19 // pred_fallthru
          _
        // Predicated region
        $region29: #{tpu_custom_call.1} parent=19 // pred_check
          %p265 = pneg %p129
        $region30: #{tpu_custom_call.1} parent=19 // pred_check_branch
          %267 = sbr.rel (%p265) target = $region32
        $region31: #{tpu_custom_call.1} parent=19 // pred_region
          %s268 = sand.u32 %s19, 1
          %s269 = scalar_lea.sflag [#allocation9], %s268
          %s270 = sand.u32 %s119, 1
          %s271 = smul.addr %s270, 256
          %s272 = scalar_lea.vmem [#allocation8], %s271
          %s274 = ssub.s32 4096, 4096
          %275 = vsyncadd %s269, %s274
          %s276 = smul.addr %s27, 64
          %s277 = smul.addr %s276, 64
          %s278 = scalar_lea.hbm %s3, %s277
          %s279 = sshll.u32 %s272, 4
          %s280 = int_to_ptr.vmem [resolvable:$true] %s279
          %285 = dma.hbm_to_vmem [thread:$0]  %s278, 4096, %s280, %s269, 256, 256, 16
        $region32: #{tpu_custom_call.1} parent=19 // pred_fallthru
          _
        // Predicated region
        $region33: #{tpu_custom_call.1} parent=19 // pred_check
          %p286 = pneg %p155
        $region34: #{tpu_custom_call.1} parent=19 // pred_check_branch
          %288 = sbr.rel (%p286) target = $region36
        $region35: #{tpu_custom_call.1} parent=19 // pred_region
          %s289 = sand.u32 %s19, 1
          %s290 = scalar_lea.sflag [#allocation9], %s289
          %s291 = sand.u32 %s145, 1
          %s292 = smul.addr %s291, 256
          %s293 = scalar_lea.vmem [#allocation10], %s292
          %s295 = ssub.s32 4096, 4096
          %296 = vsyncadd %s290, %s295
          %s297 = smul.addr %s27, 64
          %s298 = smul.addr %s297, 64
          %s299 = scalar_lea.hbm %s4, %s298
          %s300 = sshll.u32 %s293, 4
          %s301 = int_to_ptr.vmem [resolvable:$true] %s300
          %306 = dma.hbm_to_vmem [thread:$0]  %s299, 4096, %s301, %s290, 64, 64, 4
        $region36: #{tpu_custom_call.1} parent=19 // pred_fallthru
          _
      $region20: #{tpu_custom_call.1} parent=5 // pred_fallthru
        _
      %p307 = scmp.le.s32.totalorder 1, %s19
      %p308 = scmp.lt.s32.totalorder %s19, 5
      %p309 = pnand %p307, %p308
      %p310 = pneg %p309
      // Predicated region
      $region37: #{tpu_custom_call.1} parent=5 // pred_check
        _
      $region38: #{tpu_custom_call.1} parent=5 // pred_check_branch
        %312 = sbr.rel (%p309) target = $region40
      $region39: #{tpu_custom_call.1} parent=5 // pred_region
        %s313 = ssub.s32 %s19, 1
        // Predicated region
        $region41: #{tpu_custom_call.1} parent=39 // pred_check
          %p314 = pneg %p57
        $region42: #{tpu_custom_call.1} parent=39 // pred_check_branch
          %316 = sbr.rel (%p314) target = $region44
        $region43: #{tpu_custom_call.1} parent=39 // pred_region
          %317 = dma.done [#allocation3], 1024
        $region44: #{tpu_custom_call.1} parent=39 // pred_fallthru
          _
        %s318 = sand.u32 %s24, 1
        %s319 = scalar_lea.sflag [#allocation6], %s318
        %s320 = sand.u32 %s70, 1
        %s321 = smul.addr %s320, 8
        %s322 = scalar_lea.vmem [#allocation5], %s321
        // Predicated region
        $region45: #{tpu_custom_call.1} parent=39 // pred_check
          %p323 = pneg %p83
        $region46: #{tpu_custom_call.1} parent=39 // pred_check_branch
          %325 = sbr.rel (%p323) target = $region48
        $region47: #{tpu_custom_call.1} parent=39 // pred_region
          %326 = dma.done %s319, 128
        $region48: #{tpu_custom_call.1} parent=39 // pred_fallthru
          _
        %s327 = sand.u32 %s24, 1
        %s328 = scalar_lea.sflag [#allocation6], %s327
        %s329 = sand.u32 %s96, 1
        %s330 = smul.addr %s329, 96
        %s331 = scalar_lea.vmem [#allocation7], %s330
        // Predicated region
        $region49: #{tpu_custom_call.1} parent=39 // pred_check
          %p332 = pneg %p109
        $region50: #{tpu_custom_call.1} parent=39 // pred_check_branch
          %334 = sbr.rel (%p332) target = $region52
        $region51: #{tpu_custom_call.1} parent=39 // pred_region
          %335 = dma.done %s328, 1536
        $region52: #{tpu_custom_call.1} parent=39 // pred_fallthru
          _
        %s336 = sand.u32 %s24, 1
        %s337 = scalar_lea.sflag [#allocation9], %s336
        %s338 = sand.u32 %s122, 1
        %s339 = smul.addr %s338, 256
        %s340 = scalar_lea.vmem [#allocation8], %s339
        // Predicated region
        $region53: #{tpu_custom_call.1} parent=39 // pred_check
          %p341 = pneg %p135
        $region54: #{tpu_custom_call.1} parent=39 // pred_check_branch
          %343 = sbr.rel (%p341) target = $region56
        $region55: #{tpu_custom_call.1} parent=39 // pred_region
          %344 = dma.done %s337, 4096
        $region56: #{tpu_custom_call.1} parent=39 // pred_fallthru
          _
        %s345 = sand.u32 %s24, 1
        %s346 = scalar_lea.sflag [#allocation9], %s345
        %s347 = sand.u32 %s148, 1
        %s348 = smul.addr %s347, 256
        %s349 = scalar_lea.vmem [#allocation10], %s348
        // Predicated region
        $region57: #{tpu_custom_call.1} parent=39 // pred_check
          %p350 = pneg %p161
        $region58: #{tpu_custom_call.1} parent=39 // pred_check_branch
          %352 = sbr.rel (%p350) target = $region60
        $region59: #{tpu_custom_call.1} parent=39 // pred_region
          %353 = dma.done %s346, 4096
        $region60: #{tpu_custom_call.1} parent=39 // pred_fallthru
          _
        %p354 = pneg %p57
        %p355 = pneg %p54
        %s356 = sand.u32 %s24, 1
        %s357 = scalar_lea.sflag [#allocation6], %s356
        %s358 = sand.u32 %s70, 1
        %s359 = smul.addr %s358, 8
        %s360 = scalar_lea.vmem [#allocation5], %s359
        %p361 = pneg %p83
        %p362 = pneg %p80
        %s363 = sand.u32 %s24, 1
        %s364 = scalar_lea.sflag [#allocation6], %s363
        %s365 = sand.u32 %s96, 1
        %s366 = smul.addr %s365, 96
        %s367 = scalar_lea.vmem [#allocation7], %s366
        %p368 = pneg %p109
        %p369 = pneg %p106
        %s370 = sand.u32 %s24, 1
        %s371 = scalar_lea.sflag [#allocation9], %s370
        %s372 = sand.u32 %s122, 1
        %s373 = smul.addr %s372, 256
        %s374 = scalar_lea.vmem [#allocation8], %s373
        %p375 = pneg %p135
        %p376 = pneg %p132
        %s377 = sand.u32 %s24, 1
        %s378 = scalar_lea.sflag [#allocation9], %s377
        %s379 = sand.u32 %s148, 1
        %s380 = smul.addr %s379, 256
        %s381 = scalar_lea.vmem [#allocation10], %s380
        %p382 = pneg %p161
        %p383 = pneg %p158
        %p384 = pneg %p187
        %p385 = pneg %p184
        %s386 = smul.u32 4, %s28
        %s387 = smul.u32 4, %s28
        %p389 = scmp.eq.s32.totalorder %s29, 0
        // Predicated region
        $region61: #{tpu_custom_call.1} parent=39 // pred_check
          %p390 = pneg %p389
        $region62: #{tpu_custom_call.1} parent=39 // pred_check_branch
          %392 = sbr.rel (%p390) target = $region64
        $region63: #{tpu_custom_call.1} parent=39 // pred_region
          %v393 = vld [vmem:[#allocation2] sm:$0xff]
          %v394 = vld [vmem:[#allocation2 + $0x8] sm:$0xff]
          %v395 = vld [vmem:[#allocation2 + $0x10] sm:$0xff]
          %v396 = vld [vmem:[#allocation2 + $0x18] sm:$0xff]
          %v397 = vld [vmem:[#allocation2 + $0x20] sm:$0xff]
          %v398 = vld [vmem:[#allocation2 + $0x28] sm:$0xff]
          %v399 = vld [vmem:[#allocation2 + $0x30] sm:$0xff]
          %v400 = vld [vmem:[#allocation2 + $0x38] sm:$0xff]
          %401 = vst [vmem:[#allocation11] sm:$0xff] %v393
          %402 = vst [vmem:[#allocation11 + $0x8] sm:$0xff] %v394
          %403 = vst [vmem:[#allocation11 + $0x10] sm:$0xff] %v395
          %404 = vst [vmem:[#allocation11 + $0x18] sm:$0xff] %v396
          %405 = vst [vmem:[#allocation11 + $0x20] sm:$0xff] %v397
          %406 = vst [vmem:[#allocation11 + $0x28] sm:$0xff] %v398
          %407 = vst [vmem:[#allocation11 + $0x30] sm:$0xff] %v399
          %408 = vst [vmem:[#allocation11 + $0x38] sm:$0xff] %v400
        $region64: #{tpu_custom_call.1} parent=39 // pred_fallthru
          _
        %p409 = scmp.eq.s32.totalorder %s29, 2
        // Predicated region
        $region65: #{tpu_custom_call.1} parent=39 // pred_check
          %p410 = pneg %p409
        $region66: #{tpu_custom_call.1} parent=39 // pred_check_branch
          %412 = sbr.rel (%p410) target = $region68
        $region67: #{tpu_custom_call.1} parent=39 // pred_region
          %v413 = vlaneseq
          %v414 = vshrl.u32 %v413, 7
          %v415 = vadd.s32 %v414, 8
          %vm416 = vcmp.lt.s32.totalorder %v414, 8
          %vm417 = vcmp.lt.s32.totalorder %v415, 8
          %v418 = vld [vmem:[#allocation11] sm:$0xff]
          %v419 = vld [vmem:[#allocation11 + $0x8] sm:$0xff]
          %v420 = vld [vmem:[#allocation11 + $0x10] sm:$0xff]
          %v421 = vld [vmem:[#allocation11 + $0x18] sm:$0xff]
          %v422 = vld [vmem:[#allocation11 + $0x20] sm:$0xff]
          %v423 = vld [vmem:[#allocation11 + $0x28] sm:$0xff]
          %v424 = vld [vmem:[#allocation11 + $0x30] sm:$0xff]
          %v425 = vld [vmem:[#allocation11 + $0x38] sm:$0xff]
          %v426 = vsel %vm416, %v418, 0.0
          %v427 = vsel %vm417, %v419, 0.0
          %v428 = vsel %vm416, %v420, 0.0
          %v429 = vsel %vm417, %v421, 0.0
          %v430 = vsel %vm416, %v422, 0.0
          %v431 = vsel %vm417, %v423, 0.0
          %v432 = vsel %vm416, %v424, 0.0
          %v433 = vsel %vm417, %v425, 0.0
          %434 = vst [vmem:[#allocation11] sm:$0xff] %v426
          %435 = vst [vmem:[#allocation11 + $0x8] sm:$0xff] %v427
          %436 = vst [vmem:[#allocation11 + $0x10] sm:$0xff] %v428
          %437 = vst [vmem:[#allocation11 + $0x18] sm:$0xff] %v429
          %438 = vst [vmem:[#allocation11 + $0x20] sm:$0xff] %v430
          %439 = vst [vmem:[#allocation11 + $0x28] sm:$0xff] %v431
          %440 = vst [vmem:[#allocation11 + $0x30] sm:$0xff] %v432
          %441 = vst [vmem:[#allocation11 + $0x38] sm:$0xff] %v433
        $region68: #{tpu_custom_call.1} parent=39 // pred_fallthru
          _
        %v442 = vld [vmem:[%s331] ss:$0 sm:$0xff]
        %v443 = vld [vmem:[%s331 + $0x1] ss:$0 sm:$0xff]
        %v444 = vld [vmem:[%s331 + $0x2] ss:$0 sm:$0xff]
        %v445 = vld [vmem:[%s331 + $0x3] ss:$0 sm:$0xff]
        %s446 = scalar_lea.vmem %s331, 4 [#allocation7]
        %v447 = vld [vmem:[%s446] ss:$8 sm:$0xf]
        %v448 = vld [vmem:[%s331 + $0x5] ss:$0 sm:$0xff]
        %v449 = vld [vmem:[%s331 + $0x20] sm:$0xff]
        %v450 = vld [vmem:[%s331 + $0x40] sm:$0xff]
        %v451 = vld [vmem:[#allocation11] sm:$0xff]
        %v452 = vld [vmem:[#allocation11 + $0x8] sm:$0xff]
        %v453 = vld [vmem:[#allocation11 + $0x10] sm:$0xff]
        %v454 = vld [vmem:[#allocation11 + $0x18] sm:$0xff]
        %v455 = vld [vmem:[#allocation11 + $0x20] sm:$0xff]
        %v456 = vld [vmem:[#allocation11 + $0x28] sm:$0xff]
        %v457 = vld [vmem:[#allocation11 + $0x30] sm:$0xff]
        %v458 = vld [vmem:[#allocation11 + $0x38] sm:$0xff]
        %459 = vadd.xlane.f32.xlu0 %v451
        %v460 = vpop.xlane.xlu0 %459
        %461 = vadd.xlane.f32.xlu0 %v452
        %v462 = vpop.xlane.xlu0 %461
        %463 = vadd.xlane.f32.xlu0 %v453
        %v464 = vpop.xlane.xlu0 %463
        %465 = vadd.xlane.f32.xlu0 %v454
        %v466 = vpop.xlane.xlu0 %465
        %467 = vadd.xlane.f32.xlu0 %v455
        %v468 = vpop.xlane.xlu0 %467
        %469 = vadd.xlane.f32.xlu0 %v456
        %v470 = vpop.xlane.xlu0 %469
        %471 = vadd.xlane.f32.xlu0 %v457
        %v472 = vpop.xlane.xlu0 %471
        %473 = vadd.xlane.f32.xlu0 %v458
        %v474 = vpop.xlane.xlu0 %473
        %v475 = vrcp.pop 128.0
        %v476 = vmul.f32 %v460, %v475
        %v477 = vmul.f32 %v462, %v475
        %v478 = vmul.f32 %v464, %v475
        %v479 = vmul.f32 %v466, %v475
        %v480 = vmul.f32 %v468, %v475
        %v481 = vmul.f32 %v470, %v475
        %v482 = vmul.f32 %v472, %v475
        %v483 = vmul.f32 %v474, %v475
        %v484 = vsub.f32 %v451, %v476
        %v485 = vsub.f32 %v452, %v477
        %v486 = vsub.f32 %v453, %v478
        %v487 = vsub.f32 %v454, %v479
        %v488 = vsub.f32 %v455, %v480
        %v489 = vsub.f32 %v456, %v481
        %v490 = vsub.f32 %v457, %v482
        %v491 = vsub.f32 %v458, %v483
        %v492 = vmul.f32 %v484, %v484
        %v493 = vmul.f32 %v485, %v485
        %v494 = vmul.f32 %v486, %v486
        %v495 = vmul.f32 %v487, %v487
        %v496 = vmul.f32 %v488, %v488
        %v497 = vmul.f32 %v489, %v489
        %v498 = vmul.f32 %v490, %v490
        %v499 = vmul.f32 %v491, %v491
        %500 = vadd.xlane.f32.xlu0 %v492
        %v501 = vpop.xlane.xlu0 %500
        %502 = vadd.xlane.f32.xlu0 %v493
        %v503 = vpop.xlane.xlu0 %502
        %504 = vadd.xlane.f32.xlu0 %v494
        %v505 = vpop.xlane.xlu0 %504
        %506 = vadd.xlane.f32.xlu0 %v495
        %v507 = vpop.xlane.xlu0 %506
        %508 = vadd.xlane.f32.xlu0 %v496
        %v509 = vpop.xlane.xlu0 %508
        %510 = vadd.xlane.f32.xlu0 %v497
        %v511 = vpop.xlane.xlu0 %510
        %512 = vadd.xlane.f32.xlu0 %v498
        %v513 = vpop.xlane.xlu0 %512
        %514 = vadd.xlane.f32.xlu0 %v499
        %v515 = vpop.xlane.xlu0 %514
        %v516 = vmul.f32 %v501, %v475
        %v517 = vmul.f32 %v503, %v475
        %v518 = vmul.f32 %v505, %v475
        %v519 = vmul.f32 %v507, %v475
        %v520 = vmul.f32 %v509, %v475
        %v521 = vmul.f32 %v511, %v475
        %v522 = vmul.f32 %v513, %v475
        %v523 = vmul.f32 %v515, %v475
        %v524 = vadd.f32 %v516, 1e-05
        %v525 = vadd.f32 %v517, 1e-05
        %v526 = vadd.f32 %v518, 1e-05
        %v527 = vadd.f32 %v519, 1e-05
        %v528 = vadd.f32 %v520, 1e-05
        %v529 = vadd.f32 %v521, 1e-05
        %v530 = vadd.f32 %v522, 1e-05
        %v531 = vadd.f32 %v523, 1e-05
        %v532 = vrsqrt.pop %v524
        %v533 = vrsqrt.pop %v525
        %v534 = vrsqrt.pop %v526
        %v535 = vrsqrt.pop %v527
        %v536 = vrsqrt.pop %v528
        %v537 = vrsqrt.pop %v529
        %v538 = vrsqrt.pop %v530
        %v539 = vrsqrt.pop %v531
        %v540 = vmul.f32 %v484, %v532
        %v541 = vmul.f32 %v485, %v533
        %v542 = vmul.f32 %v486, %v534
        %v543 = vmul.f32 %v487, %v535
        %v544 = vmul.f32 %v488, %v536
        %v545 = vmul.f32 %v489, %v537
        %v546 = vmul.f32 %v490, %v538
        %v547 = vmul.f32 %v491, %v539
        %v548 = vmul.f32 %v540, %v442
        %v549 = vmul.f32 %v541, %v442
        %v550 = vmul.f32 %v542, %v442
        %v551 = vmul.f32 %v543, %v442
        %v552 = vmul.f32 %v544, %v442
        %v553 = vmul.f32 %v545, %v442
        %v554 = vmul.f32 %v546, %v442
        %v555 = vmul.f32 %v547, %v442
        %v556 = vadd.f32 %v548, %v443
        %v557 = vadd.f32 %v549, %v443
        %v558 = vadd.f32 %v550, %v443
        %v559 = vadd.f32 %v551, %v443
        %v560 = vadd.f32 %v552, %v443
        %v561 = vadd.f32 %v553, %v443
        %v562 = vadd.f32 %v554, %v443
        %v563 = vadd.f32 %v555, %v443
        %v564 = vld [vmem:[%s322] sm:$0xf]
        %v565 = vld [vmem:[%s322 + $0x4] sm:$0xf]
        %v566 = vpack.c.bf16 %v557, %v556
        %v567 = vpack.c.bf16 %v559, %v558
        %v568 = vpack.c.bf16 %v561, %v560
        %v569 = vpack.c.bf16 %v563, %v562
        %571 = vset.pattern.permute.xlu0 0
        %572 = vperm.xlu0 %571, %v449
        %v573 = vpop.permute.xlu0 %572
        %576 = vset.pattern.permute.xlu0 0
        %577 = vperm.xlu0 %576, %v450
        %v578 = vpop.permute.xlu0 %577
        %v582 = vunpack.c.l.b16 %v564
        %v583 = vunpack.c.l.b16 %v565
        %v584 = vpack.c.b16 %v583, %v582
        %vm585 = vcmask 130048
        %v587 = vsel %vm585, %v584, 0
        %589 = vmatprep.subr.bf16.mxu0 0
        %590 = vmatpush1.bf16.msra.mxu0 %v566
        %591 = vmatprep.subr.bf16.mxu0 0
        %592 = vmatpush1.bf16.msra.mxu0 0
        %593 = vmatprep.subr.bf16.mxu0 0
        %594 = vmatpush1.bf16.msra.mxu0 0
        %595 = vmatprep.subr.bf16.mxu0 0
        %596 = vmatpush1.bf16.msra.mxu0 0
        %597 = vmatprep.subr.bf16.mxu0 0
        %598 = vmatpush1.bf16.msra.mxu0 0
        %599 = vmatprep.subr.bf16.mxu0 0
        %600 = vmatpush1.bf16.msra.mxu0 0
        %601 = vmatprep.subr.bf16.mxu0 0
        %602 = vmatpush1.bf16.msra.mxu0 0
        %603 = vmatprep.subr.bf16.mxu0 0
        %604 = vmatpush1.bf16.msra.mxu0 0
        %605 = vmatprep.subr.bf16.mxu0 0
        %606 = vmatpush1.bf16.msra.mxu0 0
        %607 = vmatprep.subr.bf16.mxu0 0
        %608 = vmatpush1.bf16.msra.mxu0 0
        %609 = vmatprep.subr.bf16.mxu0 0
        %610 = vmatpush1.bf16.msra.mxu0 0
        %611 = vmatprep.subr.bf16.mxu0 0
        %612 = vmatpush1.bf16.msra.mxu0 0
        %613 = vmatprep.subr.bf16.mxu0 0
        %614 = vmatpush1.bf16.msra.mxu0 0
        %615 = vmatprep.subr.bf16.mxu0 0
        %616 = vmatpush1.bf16.msra.mxu0 0
        %617 = vmatprep.subr.bf16.mxu0 0
        %618 = vmatpush1.bf16.msra.mxu0 0
        %619 = vmatprep.subr.bf16.mxu0 0
        %620 = vmatpush1.bf16.msra.mxu0 0
        %621 = vmatprep.mubr.bf16.mxu0 0
        %622 = vmatmul.mubr.bf16.gmra.mrb[0].mxu0 %v587
        %v623 = vpop.f32.mrb[0].mxu0
        %v624 = vadd.f32 %v573, %v623
        %v625 = vpop.f32.mrb[0].mxu0
        %v626 = vpop.f32.mrb[0].mxu0
        %v627 = vadd.f32 %v578, %v626
        %v628 = vpop.f32.mrb[0].mxu0
        %629 = vdwg.mxu0
        %630 = vmatprep.subr.bf16.mxu0 0
        %631 = vmatpush1.bf16.msra.mxu0 %v567
        %632 = vmatprep.subr.bf16.mxu0 0
        %633 = vmatpush1.bf16.msra.mxu0 0
        %634 = vmatprep.subr.bf16.mxu0 0
        %635 = vmatpush1.bf16.msra.mxu0 0
        %636 = vmatprep.subr.bf16.mxu0 0
        %637 = vmatpush1.bf16.msra.mxu0 0
        %638 = vmatprep.subr.bf16.mxu0 0
        %639 = vmatpush1.bf16.msra.mxu0 0
        %640 = vmatprep.subr.bf16.mxu0 0
        %641 = vmatpush1.bf16.msra.mxu0 0
        %642 = vmatprep.subr.bf16.mxu0 0
        %643 = vmatpush1.bf16.msra.mxu0 0
        %644 = vmatprep.subr.bf16.mxu0 0
        %645 = vmatpush1.bf16.msra.mxu0 0
        %646 = vmatprep.subr.bf16.mxu0 0
        %647 = vmatpush1.bf16.msra.mxu0 0
        %648 = vmatprep.subr.bf16.mxu0 0
        %649 = vmatpush1.bf16.msra.mxu0 0
        %650 = vmatprep.subr.bf16.mxu0 0
        %651 = vmatpush1.bf16.msra.mxu0 0
        %652 = vmatprep.subr.bf16.mxu0 0
        %653 = vmatpush1.bf16.msra.mxu0 0
        %654 = vmatprep.subr.bf16.mxu0 0
        %655 = vmatpush1.bf16.msra.mxu0 0
        %656 = vmatprep.subr.bf16.mxu0 0
        %657 = vmatpush1.bf16.msra.mxu0 0
        %658 = vmatprep.subr.bf16.mxu0 0
        %659 = vmatpush1.bf16.msra.mxu0 0
        %660 = vmatprep.subr.bf16.mxu0 0
        %661 = vmatpush1.bf16.msra.mxu0 0
        %662 = vmatprep.mubr.bf16.mxu0 0
        %663 = vmatmul.mubr.bf16.gmra.mrb[0].mxu0 %v587
        %v664 = vpop.f32.mrb[0].mxu0
        %v665 = vadd.f32 %v573, %v664
        %v666 = vpop.f32.mrb[0].mxu0
        %v667 = vpop.f32.mrb[0].mxu0
        %v668 = vadd.f32 %v578, %v667
        %v669 = vpop.f32.mrb[0].mxu0
        %670 = vdwg.mxu0
        %671 = vmatprep.subr.bf16.mxu0 0
        %672 = vmatpush1.bf16.msra.mxu0 %v568
        %673 = vmatprep.subr.bf16.mxu0 0
        %674 = vmatpush1.bf16.msra.mxu0 0
        %675 = vmatprep.subr.bf16.mxu0 0
        %676 = vmatpush1.bf16.msra.mxu0 0
        %677 = vmatprep.subr.bf16.mxu0 0
        %678 = vmatpush1.bf16.msra.mxu0 0
        %679 = vmatprep.subr.bf16.mxu0 0
        %680 = vmatpush1.bf16.msra.mxu0 0
        %681 = vmatprep.subr.bf16.mxu0 0
        %682 = vmatpush1.bf16.msra.mxu0 0
        %683 = vmatprep.subr.bf16.mxu0 0
        %684 = vmatpush1.bf16.msra.mxu0 0
        %685 = vmatprep.subr.bf16.mxu0 0
        %686 = vmatpush1.bf16.msra.mxu0 0
        %687 = vmatprep.subr.bf16.mxu0 0
        %688 = vmatpush1.bf16.msra.mxu0 0
        %689 = vmatprep.subr.bf16.mxu0 0
        %690 = vmatpush1.bf16.msra.mxu0 0
        %691 = vmatprep.subr.bf16.mxu0 0
        %692 = vmatpush1.bf16.msra.mxu0 0
        %693 = vmatprep.subr.bf16.mxu0 0
        %694 = vmatpush1.bf16.msra.mxu0 0
        %695 = vmatprep.subr.bf16.mxu0 0
        %696 = vmatpush1.bf16.msra.mxu0 0
        %697 = vmatprep.subr.bf16.mxu0 0
        %698 = vmatpush1.bf16.msra.mxu0 0
        %699 = vmatprep.subr.bf16.mxu0 0
        %700 = vmatpush1.bf16.msra.mxu0 0
        %701 = vmatprep.subr.bf16.mxu0 0
        %702 = vmatpush1.bf16.msra.mxu0 0
        %703 = vmatprep.mubr.bf16.mxu0 0
        %704 = vmatmul.mubr.bf16.gmra.mrb[0].mxu0 %v587
        %v705 = vpop.f32.mrb[0].mxu0
        %v706 = vadd.f32 %v573, %v705
        %v707 = vpop.f32.mrb[0].mxu0
        %v708 = vpop.f32.mrb[0].mxu0
        %v709 = vadd.f32 %v578, %v708
        %v710 = vpop.f32.mrb[0].mxu0
        %711 = vdwg.mxu0
        %712 = vmatprep.subr.bf16.mxu0 0
        %713 = vmatpush1.bf16.msra.mxu0 %v569
        %714 = vmatprep.subr.bf16.mxu0 0
        %715 = vmatpush1.bf16.msra.mxu0 0
        %716 = vmatprep.subr.bf16.mxu0 0
        %717 = vmatpush1.bf16.msra.mxu0 0
        %718 = vmatprep.subr.bf16.mxu0 0
        %719 = vmatpush1.bf16.msra.mxu0 0
        %720 = vmatprep.subr.bf16.mxu0 0
        %721 = vmatpush1.bf16.msra.mxu0 0
        %722 = vmatprep.subr.bf16.mxu0 0
        %723 = vmatpush1.bf16.msra.mxu0 0
        %724 = vmatprep.subr.bf16.mxu0 0
        %725 = vmatpush1.bf16.msra.mxu0 0
        %726 = vmatprep.subr.bf16.mxu0 0
        %727 = vmatpush1.bf16.msra.mxu0 0
        %728 = vmatprep.subr.bf16.mxu0 0
        %729 = vmatpush1.bf16.msra.mxu0 0
        %730 = vmatprep.subr.bf16.mxu0 0
        %731 = vmatpush1.bf16.msra.mxu0 0
        %732 = vmatprep.subr.bf16.mxu0 0
        %733 = vmatpush1.bf16.msra.mxu0 0
        %734 = vmatprep.subr.bf16.mxu0 0
        %735 = vmatpush1.bf16.msra.mxu0 0
        %736 = vmatprep.subr.bf16.mxu0 0
        %737 = vmatpush1.bf16.msra.mxu0 0
        %738 = vmatprep.subr.bf16.mxu0 0
        %739 = vmatpush1.bf16.msra.mxu0 0
        %740 = vmatprep.subr.bf16.mxu0 0
        %741 = vmatpush1.bf16.msra.mxu0 0
        %742 = vmatprep.subr.bf16.mxu0 0
        %743 = vmatpush1.bf16.msra.mxu0 0
        %744 = vmatprep.mubr.bf16.mxu0 0
        %745 = vmatmul.mubr.bf16.gmra.mrb[0].mxu0 %v587
        %v746 = vpop.f32.mrb[0].mxu0
        %v747 = vadd.f32 %v573, %v746
        %v748 = vpop.f32.mrb[0].mxu0
        %v749 = vpop.f32.mrb[0].mxu0
        %v750 = vadd.f32 %v578, %v749
        %v751 = vpop.f32.mrb[0].mxu0
        %752 = vdwg.mxu0
        %v753 = vadd.f32 %v624, %v451
        %v754 = vadd.f32 %v627, %v452
        %v755 = vadd.f32 %v665, %v453
        %v756 = vadd.f32 %v668, %v454
        %v757 = vadd.f32 %v706, %v455
        %v758 = vadd.f32 %v709, %v456
        %v759 = vadd.f32 %v747, %v457
        %v760 = vadd.f32 %v750, %v458
        %761 = vadd.xlane.f32.xlu0 %v753
        %v762 = vpop.xlane.xlu0 %761
        %763 = vadd.xlane.f32.xlu0 %v754
        %v764 = vpop.xlane.xlu0 %763
        %765 = vadd.xlane.f32.xlu0 %v755
        %v766 = vpop.xlane.xlu0 %765
        %767 = vadd.xlane.f32.xlu0 %v756
        %v768 = vpop.xlane.xlu0 %767
        %769 = vadd.xlane.f32.xlu0 %v757
        %v770 = vpop.xlane.xlu0 %769
        %771 = vadd.xlane.f32.xlu0 %v758
        %v772 = vpop.xlane.xlu0 %771
        %773 = vadd.xlane.f32.xlu0 %v759
        %v774 = vpop.xlane.xlu0 %773
        %775 = vadd.xlane.f32.xlu0 %v760
        %v776 = vpop.xlane.xlu0 %775
        %v777 = vmul.f32 %v762, %v475
        %v778 = vmul.f32 %v764, %v475
        %v779 = vmul.f32 %v766, %v475
        %v780 = vmul.f32 %v768, %v475
        %v781 = vmul.f32 %v770, %v475
        %v782 = vmul.f32 %v772, %v475
        %v783 = vmul.f32 %v774, %v475
        %v784 = vmul.f32 %v776, %v475
        %v785 = vsub.f32 %v753, %v777
        %v786 = vsub.f32 %v754, %v778
        %v787 = vsub.f32 %v755, %v779
        %v788 = vsub.f32 %v756, %v780
        %v789 = vsub.f32 %v757, %v781
        %v790 = vsub.f32 %v758, %v782
        %v791 = vsub.f32 %v759, %v783
        %v792 = vsub.f32 %v760, %v784
        %v793 = vmul.f32 %v785, %v785
        %v794 = vmul.f32 %v786, %v786
        %v795 = vmul.f32 %v787, %v787
        %v796 = vmul.f32 %v788, %v788
        %v797 = vmul.f32 %v789, %v789
        %v798 = vmul.f32 %v790, %v790
        %v799 = vmul.f32 %v791, %v791
        %v800 = vmul.f32 %v792, %v792
        %801 = vadd.xlane.f32.xlu0 %v793
        %v802 = vpop.xlane.xlu0 %801
        %803 = vadd.xlane.f32.xlu0 %v794
        %v804 = vpop.xlane.xlu0 %803
        %805 = vadd.xlane.f32.xlu0 %v795
        %v806 = vpop.xlane.xlu0 %805
        %807 = vadd.xlane.f32.xlu0 %v796
        %v808 = vpop.xlane.xlu0 %807
        %809 = vadd.xlane.f32.xlu0 %v797
        %v810 = vpop.xlane.xlu0 %809
        %811 = vadd.xlane.f32.xlu0 %v798
        %v812 = vpop.xlane.xlu0 %811
        %813 = vadd.xlane.f32.xlu0 %v799
        %v814 = vpop.xlane.xlu0 %813
        %815 = vadd.xlane.f32.xlu0 %v800
        %v816 = vpop.xlane.xlu0 %815
        %v817 = vmul.f32 %v802, %v475
        %v818 = vmul.f32 %v804, %v475
        %v819 = vmul.f32 %v806, %v475
        %v820 = vmul.f32 %v808, %v475
        %v821 = vmul.f32 %v810, %v475
        %v822 = vmul.f32 %v812, %v475
        %v823 = vmul.f32 %v814, %v475
        %v824 = vmul.f32 %v816, %v475
        %v825 = vadd.f32 %v817, 1e-05
        %v826 = vadd.f32 %v818, 1e-05
        %v827 = vadd.f32 %v819, 1e-05
        %v828 = vadd.f32 %v820, 1e-05
        %v829 = vadd.f32 %v821, 1e-05
        %v830 = vadd.f32 %v822, 1e-05
        %v831 = vadd.f32 %v823, 1e-05
        %v832 = vadd.f32 %v824, 1e-05
        %v833 = vrsqrt.pop %v825
        %v834 = vrsqrt.pop %v826
        %v835 = vrsqrt.pop %v827
        %v836 = vrsqrt.pop %v828
        %v837 = vrsqrt.pop %v829
        %v838 = vrsqrt.pop %v830
        %v839 = vrsqrt.pop %v831
        %v840 = vrsqrt.pop %v832
        %v841 = vmul.f32 %v785, %v833
        %v842 = vmul.f32 %v786, %v834
        %v843 = vmul.f32 %v787, %v835
        %v844 = vmul.f32 %v788, %v836
        %v845 = vmul.f32 %v789, %v837
        %v846 = vmul.f32 %v790, %v838
        %v847 = vmul.f32 %v791, %v839
        %v848 = vmul.f32 %v792, %v840
        %v849 = vmul.f32 %v841, %v444
        %v850 = vmul.f32 %v842, %v444
        %v851 = vmul.f32 %v843, %v444
        %v852 = vmul.f32 %v844, %v444
        %v853 = vmul.f32 %v845, %v444
        %v854 = vmul.f32 %v846, %v444
        %v855 = vmul.f32 %v847, %v444
        %v856 = vmul.f32 %v848, %v444
        %v857 = vadd.f32 %v849, %v445
        %v858 = vadd.f32 %v850, %v445
        %v859 = vadd.f32 %v851, %v445
        %v860 = vadd.f32 %v852, %v445
        %v861 = vadd.f32 %v853, %v445
        %v862 = vadd.f32 %v854, %v445
        %v863 = vadd.f32 %v855, %v445
        %v864 = vadd.f32 %v856, %v445
        %v865 = vpack.c.bf16 %v858, %v857
        %v866 = vpack.c.bf16 %v860, %v859
        %v867 = vpack.c.bf16 %v862, %v861
        %v868 = vpack.c.bf16 %v864, %v863
        %v869 = vld [vmem:[%s340] sm:$0xff]
        %v870 = vld [vmem:[%s340 + $0x8] sm:$0xff]
        %v871 = vld [vmem:[%s340 + $0x10] sm:$0xff]
        %v872 = vld [vmem:[%s340 + $0x18] sm:$0xff]
        %v873 = vld [vmem:[%s340 + $0x20] sm:$0xff]
        %v874 = vld [vmem:[%s340 + $0x28] sm:$0xff]
        %v875 = vld [vmem:[%s340 + $0x30] sm:$0xff]
        %v876 = vld [vmem:[%s340 + $0x38] sm:$0xff]
        %v877 = vld [vmem:[%s340 + $0x40] sm:$0xff]
        %v878 = vld [vmem:[%s340 + $0x48] sm:$0xff]
        %v879 = vld [vmem:[%s340 + $0x50] sm:$0xff]
        %v880 = vld [vmem:[%s340 + $0x58] sm:$0xff]
        %v881 = vld [vmem:[%s340 + $0x60] sm:$0xff]
        %v882 = vld [vmem:[%s340 + $0x68] sm:$0xff]
        %v883 = vld [vmem:[%s340 + $0x70] sm:$0xff]
        %v884 = vld [vmem:[%s340 + $0x78] sm:$0xff]
        %v885 = vld [vmem:[%s340 + $0x80] sm:$0xff]
        %v886 = vld [vmem:[%s340 + $0x88] sm:$0xff]
        %v887 = vld [vmem:[%s340 + $0x90] sm:$0xff]
        %v888 = vld [vmem:[%s340 + $0x98] sm:$0xff]
        %v889 = vld [vmem:[%s340 + $0xa0] sm:$0xff]
        %v890 = vld [vmem:[%s340 + $0xa8] sm:$0xff]
        %v891 = vld [vmem:[%s340 + $0xb0] sm:$0xff]
        %v892 = vld [vmem:[%s340 + $0xb8] sm:$0xff]
        %v893 = vld [vmem:[%s340 + $0xc0] sm:$0xff]
        %v894 = vld [vmem:[%s340 + $0xc8] sm:$0xff]
        %v895 = vld [vmem:[%s340 + $0xd0] sm:$0xff]
        %v896 = vld [vmem:[%s340 + $0xd8] sm:$0xff]
        %v897 = vld [vmem:[%s340 + $0xe0] sm:$0xff]
        %v898 = vld [vmem:[%s340 + $0xe8] sm:$0xff]
        %v899 = vld [vmem:[%s340 + $0xf0] sm:$0xff]
        %v900 = vld [vmem:[%s340 + $0xf8] sm:$0xff]
        %v902 = vlaneseq
        %v903 = vshrl.u32 %v902, 7
        %v904 = vsub.s32 0, %v903
        %v905 = vrot.slane %v447, %v904
        %v906 = vlaneseq
        %v907 = vshrl.u32 %v906, 7
        %v908 = vsub.s32 1, %v907
        %v909 = vrot.slane %v447, %v908
        %v910 = vlaneseq
        %v911 = vshrl.u32 %v910, 7
        %v912 = vsub.s32 2, %v911
        %v913 = vrot.slane %v447, %v912
        %v914 = vlaneseq
        %v915 = vshrl.u32 %v914, 7
        %v916 = vsub.s32 3, %v915
        %v917 = vrot.slane %v447, %v916
        %v954 = vunpack.c.l.b16 %v869
        %v955 = vunpack.c.h.b16 %v869
        %v956 = vunpack.c.l.b16 %v870
        %v957 = vunpack.c.h.b16 %v870
        %v958 = vunpack.c.l.b16 %v871
        %v959 = vunpack.c.h.b16 %v871
        %v960 = vunpack.c.l.b16 %v872
        %v961 = vunpack.c.h.b16 %v872
        %v962 = vunpack.c.l.b16 %v873
        %v963 = vunpack.c.h.b16 %v873
        %v964 = vunpack.c.l.b16 %v874
        %v965 = vunpack.c.h.b16 %v874
        %v966 = vunpack.c.l.b16 %v875
        %v967 = vunpack.c.h.b16 %v875
        %v968 = vunpack.c.l.b16 %v876
        %v969 = vunpack.c.h.b16 %v876
        %v970 = vunpack.c.l.b16 %v877
        %v971 = vunpack.c.h.b16 %v877
        %v972 = vunpack.c.l.b16 %v878
        %v973 = vunpack.c.h.b16 %v878
        %v974 = vunpack.c.l.b16 %v879
        %v975 = vunpack.c.h.b16 %v879
        %v976 = vunpack.c.l.b16 %v880
        %v977 = vunpack.c.h.b16 %v880
        %v978 = vunpack.c.l.b16 %v881
        %v979 = vunpack.c.h.b16 %v881
        %v980 = vunpack.c.l.b16 %v882
        %v981 = vunpack.c.h.b16 %v882
        %v982 = vunpack.c.l.b16 %v883
        %v983 = vunpack.c.h.b16 %v883
        %v984 = vunpack.c.l.b16 %v884
        %v985 = vunpack.c.h.b16 %v884
        %v986 = vunpack.c.l.b16 %v885
        %v987 = vunpack.c.h.b16 %v885
        %v988 = vunpack.c.l.b16 %v886
        %v989 = vunpack.c.h.b16 %v886
        %v990 = vunpack.c.l.b16 %v887
        %v991 = vunpack.c.h.b16 %v887
        %v992 = vunpack.c.l.b16 %v888
        %v993 = vunpack.c.h.b16 %v888
        %v994 = vunpack.c.l.b16 %v889
        %v995 = vunpack.c.h.b16 %v889
        %v996 = vunpack.c.l.b16 %v890
        %v997 = vunpack.c.h.b16 %v890
        %v998 = vunpack.c.l.b16 %v891
        %v999 = vunpack.c.h.b16 %v891
        %v1000 = vunpack.c.l.b16 %v892
        %v1001 = vunpack.c.h.b16 %v892
        %v1002 = vunpack.c.l.b16 %v893
        %v1003 = vunpack.c.h.b16 %v893
        %v1004 = vunpack.c.l.b16 %v894
        %v1005 = vunpack.c.h.b16 %v894
        %v1006 = vunpack.c.l.b16 %v895
        %v1007 = vunpack.c.h.b16 %v895
        %v1008 = vunpack.c.l.b16 %v896
        %v1009 = vunpack.c.h.b16 %v896
        %v1010 = vunpack.c.l.b16 %v897
        %v1011 = vunpack.c.h.b16 %v897
        %v1012 = vunpack.c.l.b16 %v898
        %v1013 = vunpack.c.h.b16 %v898
        %v1014 = vunpack.c.l.b16 %v899
        %v1015 = vunpack.c.h.b16 %v899
        %v1016 = vunpack.c.l.b16 %v900
        %v1017 = vunpack.c.h.b16 %v900
        %v1018 = vpack.c.b16 %v958, %v954
        %v1019 = vpack.c.b16 %v959, %v955
        %v1020 = vpack.c.b16 %v960, %v956
        %v1021 = vpack.c.b16 %v961, %v957
        %v1022 = vpack.c.b16 %v966, %v962
        %v1023 = vpack.c.b16 %v967, %v963
        %v1024 = vpack.c.b16 %v968, %v964
        %v1025 = vpack.c.b16 %v969, %v965
        %v1026 = vpack.c.b16 %v974, %v970
        %v1027 = vpack.c.b16 %v975, %v971
        %v1028 = vpack.c.b16 %v976, %v972
        %v1029 = vpack.c.b16 %v977, %v973
        %v1030 = vpack.c.b16 %v982, %v978
        %v1031 = vpack.c.b16 %v983, %v979
        %v1032 = vpack.c.b16 %v984, %v980
        %v1033 = vpack.c.b16 %v985, %v981
        %v1034 = vpack.c.b16 %v990, %v986
        %v1035 = vpack.c.b16 %v991, %v987
        %v1036 = vpack.c.b16 %v992, %v988
        %v1037 = vpack.c.b16 %v993, %v989
        %v1038 = vpack.c.b16 %v998, %v994
        %v1039 = vpack.c.b16 %v999, %v995
        %v1040 = vpack.c.b16 %v1000, %v996
        %v1041 = vpack.c.b16 %v1001, %v997
        %v1042 = vpack.c.b16 %v1006, %v1002
        %v1043 = vpack.c.b16 %v1007, %v1003
        %v1044 = vpack.c.b16 %v1008, %v1004
        %v1045 = vpack.c.b16 %v1009, %v1005
        %v1046 = vpack.c.b16 %v1014, %v1010
        %v1047 = vpack.c.b16 %v1015, %v1011
        %v1048 = vpack.c.b16 %v1016, %v1012
        %v1049 = vpack.c.b16 %v1017, %v1013
        %1082 = vmatprep.subr.bf16.mxu0 %v1019
        %1083 = vmatpush1.bf16.msra.mxu0 %v1018
        %1084 = vmatprep.subr.bf16.mxu0 %v1023
        %1085 = vmatpush1.bf16.msra.mxu0 %v1022
        %1086 = vmatprep.subr.bf16.mxu0 %v1027
        %1087 = vmatpush1.bf16.msra.mxu0 %v1026
        %1088 = vmatprep.subr.bf16.mxu0 %v1031
        %1089 = vmatpush1.bf16.msra.mxu0 %v1030
        %1090 = vmatprep.subr.bf16.mxu0 %v1035
        %1091 = vmatpush1.bf16.msra.mxu0 %v1034
        %1092 = vmatprep.subr.bf16.mxu0 %v1039
        %1093 = vmatpush1.bf16.msra.mxu0 %v1038
        %1094 = vmatprep.subr.bf16.mxu0 %v1043
        %1095 = vmatpush1.bf16.msra.mxu0 %v1042
        %1096 = vmatprep.subr.bf16.mxu0 %v1047
        %1097 = vmatpush1.bf16.msra.mxu0 %v1046
        %1098 = vmatprep.subr.bf16.mxu0 0
        %1099 = vmatpush1.bf16.msra.mxu0 0
        %1100 = vmatprep.subr.bf16.mxu0 0
        %1101 = vmatpush1.bf16.msra.mxu0 0
        %1102 = vmatprep.subr.bf16.mxu0 0
        %1103 = vmatpush1.bf16.msra.mxu0 0
        %1104 = vmatprep.subr.bf16.mxu0 0
        %1105 = vmatpush1.bf16.msra.mxu0 0
        %1106 = vmatprep.subr.bf16.mxu0 0
        %1107 = vmatpush1.bf16.msra.mxu0 0
        %1108 = vmatprep.subr.bf16.mxu0 0
        %1109 = vmatpush1.bf16.msra.mxu0 0
        %1110 = vmatprep.subr.bf16.mxu0 0
        %1111 = vmatpush1.bf16.msra.mxu0 0
        %1112 = vmatprep.subr.bf16.mxu0 0
        %1113 = vmatpush1.bf16.msra.mxu0 0
        %1114 = vmatprep.mubr.bf16.mxu0 0
        %1115 = vmatmul.mubr.bf16.gmra.mrb[0].mxu0 %v865
        %v1116 = vpop.f32.mrb[0].mxu0
        %v1117 = vadd.f32 %v905, %v1116
        %v1118 = vpop.f32.mrb[0].mxu0
        %v1119 = vadd.f32 %v909, %v1118
        %v1120 = vpop.f32.mrb[0].mxu0
        %v1121 = vadd.f32 %v905, %v1120
        %v1122 = vpop.f32.mrb[0].mxu0
        %v1123 = vadd.f32 %v909, %v1122
        %1124 = vmatprep.mubr.bf16.mxu0 0
        %1125 = vmatmul.mubr.bf16.gmra.mrb[0].mxu0 %v866
        %v1126 = vpop.f32.mrb[0].mxu0
        %v1127 = vadd.f32 %v905, %v1126
        %v1128 = vpop.f32.mrb[0].mxu0
        %v1129 = vadd.f32 %v909, %v1128
        %v1130 = vpop.f32.mrb[0].mxu0
        %v1131 = vadd.f32 %v905, %v1130
        %v1132 = vpop.f32.mrb[0].mxu0
        %v1133 = vadd.f32 %v909, %v1132
        %1134 = vmatprep.mubr.bf16.mxu0 0
        %1135 = vmatmul.mubr.bf16.gmra.mrb[0].mxu0 %v867
        %v1136 = vpop.f32.mrb[0].mxu0
        %v1137 = vadd.f32 %v905, %v1136
        %v1138 = vpop.f32.mrb[0].mxu0
        %v1139 = vadd.f32 %v909, %v1138
        %v1140 = vpop.f32.mrb[0].mxu0
        %v1141 = vadd.f32 %v905, %v1140
        %v1142 = vpop.f32.mrb[0].mxu0
        %v1143 = vadd.f32 %v909, %v1142
        %1144 = vmatprep.mubr.bf16.mxu0 0
        %1145 = vmatmul.mubr.bf16.gmra.mrb[0].mxu0 %v868
        %v1146 = vpop.f32.mrb[0].mxu0
        %v1147 = vadd.f32 %v905, %v1146
        %v1148 = vpop.f32.mrb[0].mxu0
        %v1149 = vadd.f32 %v909, %v1148
        %v1150 = vpop.f32.mrb[0].mxu0
        %v1151 = vadd.f32 %v905, %v1150
        %v1152 = vpop.f32.mrb[0].mxu0
        %v1153 = vadd.f32 %v909, %v1152
        %1154 = vdwg.mxu0
        %1155 = vmatprep.subr.bf16.mxu0 %v1021
        %1156 = vmatpush1.bf16.msra.mxu0 %v1020
        %1157 = vmatprep.subr.bf16.mxu0 %v1025
        %1158 = vmatpush1.bf16.msra.mxu0 %v1024
        %1159 = vmatprep.subr.bf16.mxu0 %v1029
        %1160 = vmatpush1.bf16.msra.mxu0 %v1028
        %1161 = vmatprep.subr.bf16.mxu0 %v1033
        %1162 = vmatpush1.bf16.msra.mxu0 %v1032
        %1163 = vmatprep.subr.bf16.mxu0 %v1037
        %1164 = vmatpush1.bf16.msra.mxu0 %v1036
        %1165 = vmatprep.subr.bf16.mxu0 %v1041
        %1166 = vmatpush1.bf16.msra.mxu0 %v1040
        %1167 = vmatprep.subr.bf16.mxu0 %v1045
        %1168 = vmatpush1.bf16.msra.mxu0 %v1044
        %1169 = vmatprep.subr.bf16.mxu0 %v1049
        %1170 = vmatpush1.bf16.msra.mxu0 %v1048
        %1171 = vmatprep.subr.bf16.mxu0 0
        %1172 = vmatpush1.bf16.msra.mxu0 0
        %1173 = vmatprep.subr.bf16.mxu0 0
        %1174 = vmatpush1.bf16.msra.mxu0 0
        %1175 = vmatprep.subr.bf16.mxu0 0
        %1176 = vmatpush1.bf16.msra.mxu0 0
        %1177 = vmatprep.subr.bf16.mxu0 0
        %1178 = vmatpush1.bf16.msra.mxu0 0
        %1179 = vmatprep.subr.bf16.mxu0 0
        %1180 = vmatpush1.bf16.msra.mxu0 0
        %1181 = vmatprep.subr.bf16.mxu0 0
        %1182 = vmatpush1.bf16.msra.mxu0 0
        %1183 = vmatprep.subr.bf16.mxu0 0
        %1184 = vmatpush1.bf16.msra.mxu0 0
        %1185 = vmatprep.subr.bf16.mxu0 0
        %1186 = vmatpush1.bf16.msra.mxu0 0
        %1187 = vmatprep.mubr.bf16.mxu0 0
        %1188 = vmatmul.mubr.bf16.gmra.mrb[0].mxu0 %v865
        %v1189 = vpop.f32.mrb[0].mxu0
        %v1190 = vadd.f32 %v913, %v1189
        %v1191 = vpop.f32.mrb[0].mxu0
        %v1192 = vadd.f32 %v917, %v1191
        %v1193 = vpop.f32.mrb[0].mxu0
        %v1194 = vadd.f32 %v913, %v1193
        %v1195 = vpop.f32.mrb[0].mxu0
        %v1196 = vadd.f32 %v917, %v1195
        %1197 = vmatprep.mubr.bf16.mxu0 0
        %1198 = vmatmul.mubr.bf16.gmra.mrb[0].mxu0 %v866
        %v1199 = vpop.f32.mrb[0].mxu0
        %v1200 = vadd.f32 %v913, %v1199
        %v1201 = vpop.f32.mrb[0].mxu0
        %v1202 = vadd.f32 %v917, %v1201
        %v1203 = vpop.f32.mrb[0].mxu0
        %v1204 = vadd.f32 %v913, %v1203
        %v1205 = vpop.f32.mrb[0].mxu0
        %v1206 = vadd.f32 %v917, %v1205
        %1207 = vmatprep.mubr.bf16.mxu0 0
        %1208 = vmatmul.mubr.bf16.gmra.mrb[0].mxu0 %v867
        %v1209 = vpop.f32.mrb[0].mxu0
        %v1210 = vadd.f32 %v913, %v1209
        %v1211 = vpop.f32.mrb[0].mxu0
        %v1212 = vadd.f32 %v917, %v1211
        %v1213 = vpop.f32.mrb[0].mxu0
        %v1214 = vadd.f32 %v913, %v1213
        %v1215 = vpop.f32.mrb[0].mxu0
        %v1216 = vadd.f32 %v917, %v1215
        %1217 = vmatprep.mubr.bf16.mxu0 0
        %1218 = vmatmul.mubr.bf16.gmra.mrb[0].mxu0 %v868
        %v1219 = vpop.f32.mrb[0].mxu0
        %v1220 = vadd.f32 %v913, %v1219
        %v1221 = vpop.f32.mrb[0].mxu0
        %v1222 = vadd.f32 %v917, %v1221
        %v1223 = vpop.f32.mrb[0].mxu0
        %v1224 = vadd.f32 %v913, %v1223
        %v1225 = vpop.f32.mrb[0].mxu0
        %v1226 = vadd.f32 %v917, %v1225
        %1227 = vdwg.mxu0
        %v1228 = vmul.f32 %v1117, 0.5
        %v1229 = vmul.f32 %v1119, 0.5
        %v1230 = vmul.f32 %v1190, 0.5
        %v1231 = vmul.f32 %v1192, 0.5
        %v1232 = vmul.f32 %v1121, 0.5
        %v1233 = vmul.f32 %v1123, 0.5
        %v1234 = vmul.f32 %v1194, 0.5
        %v1235 = vmul.f32 %v1196, 0.5
        %v1236 = vmul.f32 %v1127, 0.5
        %v1237 = vmul.f32 %v1129, 0.5
        %v1238 = vmul.f32 %v1200, 0.5
        %v1239 = vmul.f32 %v1202, 0.5
        %v1240 = vmul.f32 %v1131, 0.5
        %v1241 = vmul.f32 %v1133, 0.5
        %v1242 = vmul.f32 %v1204, 0.5
        %v1243 = vmul.f32 %v1206, 0.5
        %v1244 = vmul.f32 %v1137, 0.5
        %v1245 = vmul.f32 %v1139, 0.5
        %v1246 = vmul.f32 %v1210, 0.5
        %v1247 = vmul.f32 %v1212, 0.5
        %v1248 = vmul.f32 %v1141, 0.5
        %v1249 = vmul.f32 %v1143, 0.5
        %v1250 = vmul.f32 %v1214, 0.5
        %v1251 = vmul.f32 %v1216, 0.5
        %v1252 = vmul.f32 %v1147, 0.5
        %v1253 = vmul.f32 %v1149, 0.5
        %v1254 = vmul.f32 %v1220, 0.5
        %v1255 = vmul.f32 %v1222, 0.5
        %v1256 = vmul.f32 %v1151, 0.5
        %v1257 = vmul.f32 %v1153, 0.5
        %v1258 = vmul.f32 %v1224, 0.5
        %v1259 = vmul.f32 %v1226, 0.5
        %v1260 = vmul.f32 %v1117, 0.044715
        %v1261 = vmul.f32 %v1119, 0.044715
        %v1262 = vmul.f32 %v1190, 0.044715
        %v1263 = vmul.f32 %v1192, 0.044715
        %v1264 = vmul.f32 %v1121, 0.044715
        %v1265 = vmul.f32 %v1123, 0.044715
        %v1266 = vmul.f32 %v1194, 0.044715
        %v1267 = vmul.f32 %v1196, 0.044715
        %v1268 = vmul.f32 %v1127, 0.044715
        %v1269 = vmul.f32 %v1129, 0.044715
        %v1270 = vmul.f32 %v1200, 0.044715
        %v1271 = vmul.f32 %v1202, 0.044715
        %v1272 = vmul.f32 %v1131, 0.044715
        %v1273 = vmul.f32 %v1133, 0.044715
        %v1274 = vmul.f32 %v1204, 0.044715
        %v1275 = vmul.f32 %v1206, 0.044715
        %v1276 = vmul.f32 %v1137, 0.044715
        %v1277 = vmul.f32 %v1139, 0.044715
        %v1278 = vmul.f32 %v1210, 0.044715
        %v1279 = vmul.f32 %v1212, 0.044715
        %v1280 = vmul.f32 %v1141, 0.044715
        %v1281 = vmul.f32 %v1143, 0.044715
        %v1282 = vmul.f32 %v1214, 0.044715
        %v1283 = vmul.f32 %v1216, 0.044715
        %v1284 = vmul.f32 %v1147, 0.044715
        %v1285 = vmul.f32 %v1149, 0.044715
        %v1286 = vmul.f32 %v1220, 0.044715
        %v1287 = vmul.f32 %v1222, 0.044715
        %v1288 = vmul.f32 %v1151, 0.044715
        %v1289 = vmul.f32 %v1153, 0.044715
        %v1290 = vmul.f32 %v1224, 0.044715
        %v1291 = vmul.f32 %v1226, 0.044715
        %v1292 = vmul.f32 %v1260, %v1117
        %v1293 = vmul.f32 %v1261, %v1119
        %v1294 = vmul.f32 %v1262, %v1190
        %v1295 = vmul.f32 %v1263, %v1192
        %v1296 = vmul.f32 %v1264, %v1121
        %v1297 = vmul.f32 %v1265, %v1123
        %v1298 = vmul.f32 %v1266, %v1194
        %v1299 = vmul.f32 %v1267, %v1196
        %v1300 = vmul.f32 %v1268, %v1127
        %v1301 = vmul.f32 %v1269, %v1129
        %v1302 = vmul.f32 %v1270, %v1200
        %v1303 = vmul.f32 %v1271, %v1202
        %v1304 = vmul.f32 %v1272, %v1131
        %v1305 = vmul.f32 %v1273, %v1133
        %v1306 = vmul.f32 %v1274, %v1204
        %v1307 = vmul.f32 %v1275, %v1206
        %v1308 = vmul.f32 %v1276, %v1137
        %v1309 = vmul.f32 %v1277, %v1139
        %v1310 = vmul.f32 %v1278, %v1210
        %v1311 = vmul.f32 %v1279, %v1212
        %v1312 = vmul.f32 %v1280, %v1141
        %v1313 = vmul.f32 %v1281, %v1143
        %v1314 = vmul.f32 %v1282, %v1214
        %v1315 = vmul.f32 %v1283, %v1216
        %v1316 = vmul.f32 %v1284, %v1147
        %v1317 = vmul.f32 %v1285, %v1149
        %v1318 = vmul.f32 %v1286, %v1220
        %v1319 = vmul.f32 %v1287, %v1222
        %v1320 = vmul.f32 %v1288, %v1151
        %v1321 = vmul.f32 %v1289, %v1153
        %v1322 = vmul.f32 %v1290, %v1224
        %v1323 = vmul.f32 %v1291, %v1226
        %v1324 = vmul.f32 %v1292, %v1117
        %v1325 = vmul.f32 %v1293, %v1119
        %v1326 = vmul.f32 %v1294, %v1190
        %v1327 = vmul.f32 %v1295, %v1192
        %v1328 = vmul.f32 %v1296, %v1121
        %v1329 = vmul.f32 %v1297, %v1123
        %v1330 = vmul.f32 %v1298, %v1194
        %v1331 = vmul.f32 %v1299, %v1196
        %v1332 = vmul.f32 %v1300, %v1127
        %v1333 = vmul.f32 %v1301, %v1129
        %v1334 = vmul.f32 %v1302, %v1200
        %v1335 = vmul.f32 %v1303, %v1202
        %v1336 = vmul.f32 %v1304, %v1131
        %v1337 = vmul.f32 %v1305, %v1133
        %v1338 = vmul.f32 %v1306, %v1204
        %v1339 = vmul.f32 %v1307, %v1206
        %v1340 = vmul.f32 %v1308, %v1137
        %v1341 = vmul.f32 %v1309, %v1139
        %v1342 = vmul.f32 %v1310, %v1210
        %v1343 = vmul.f32 %v1311, %v1212
        %v1344 = vmul.f32 %v1312, %v1141
        %v1345 = vmul.f32 %v1313, %v1143
        %v1346 = vmul.f32 %v1314, %v1214
        %v1347 = vmul.f32 %v1315, %v1216
        %v1348 = vmul.f32 %v1316, %v1147
        %v1349 = vmul.f32 %v1317, %v1149
        %v1350 = vmul.f32 %v1318, %v1220
        %v1351 = vmul.f32 %v1319, %v1222
        %v1352 = vmul.f32 %v1320, %v1151
        %v1353 = vmul.f32 %v1321, %v1153
        %v1354 = vmul.f32 %v1322, %v1224
        %v1355 = vmul.f32 %v1323, %v1226
        %v1356 = vadd.f32 %v1117, %v1324
        %v1357 = vadd.f32 %v1119, %v1325
        %v1358 = vadd.f32 %v1190, %v1326
        %v1359 = vadd.f32 %v1192, %v1327
        %v1360 = vadd.f32 %v1121, %v1328
        %v1361 = vadd.f32 %v1123, %v1329
        %v1362 = vadd.f32 %v1194, %v1330
        %v1363 = vadd.f32 %v1196, %v1331
        %v1364 = vadd.f32 %v1127, %v1332
        %v1365 = vadd.f32 %v1129, %v1333
        %v1366 = vadd.f32 %v1200, %v1334
        %v1367 = vadd.f32 %v1202, %v1335
        %v1368 = vadd.f32 %v1131, %v1336
        %v1369 = vadd.f32 %v1133, %v1337
        %v1370 = vadd.f32 %v1204, %v1338
        %v1371 = vadd.f32 %v1206, %v1339
        %v1372 = vadd.f32 %v1137, %v1340
        %v1373 = vadd.f32 %v1139, %v1341
        %v1374 = vadd.f32 %v1210, %v1342
        %v1375 = vadd.f32 %v1212, %v1343
        %v1376 = vadd.f32 %v1141, %v1344
        %v1377 = vadd.f32 %v1143, %v1345
        %v1378 = vadd.f32 %v1214, %v1346
        %v1379 = vadd.f32 %v1216, %v1347
        %v1380 = vadd.f32 %v1147, %v1348
        %v1381 = vadd.f32 %v1149, %v1349
        %v1382 = vadd.f32 %v1220, %v1350
        %v1383 = vadd.f32 %v1222, %v1351
        %v1384 = vadd.f32 %v1151, %v1352
        %v1385 = vadd.f32 %v1153, %v1353
        %v1386 = vadd.f32 %v1224, %v1354
        %v1387 = vadd.f32 %v1226, %v1355
        %v1388 = vmul.f32 %v1356, 0.7978846
        %v1389 = vmul.f32 %v1357, 0.7978846
        %v1390 = vmul.f32 %v1358, 0.7978846
        %v1391 = vmul.f32 %v1359, 0.7978846
        %v1392 = vmul.f32 %v1360, 0.7978846
        %v1393 = vmul.f32 %v1361, 0.7978846
        %v1394 = vmul.f32 %v1362, 0.7978846
        %v1395 = vmul.f32 %v1363, 0.7978846
        %v1396 = vmul.f32 %v1364, 0.7978846
        %v1397 = vmul.f32 %v1365, 0.7978846
        %v1398 = vmul.f32 %v1366, 0.7978846
        %v1399 = vmul.f32 %v1367, 0.7978846
        %v1400 = vmul.f32 %v1368, 0.7978846
        %v1401 = vmul.f32 %v1369, 0.7978846
        %v1402 = vmul.f32 %v1370, 0.7978846
        %v1403 = vmul.f32 %v1371, 0.7978846
        %v1404 = vmul.f32 %v1372, 0.7978846
        %v1405 = vmul.f32 %v1373, 0.7978846
        %v1406 = vmul.f32 %v1374, 0.7978846
        %v1407 = vmul.f32 %v1375, 0.7978846
        %v1408 = vmul.f32 %v1376, 0.7978846
        %v1409 = vmul.f32 %v1377, 0.7978846
        %v1410 = vmul.f32 %v1378, 0.7978846
        %v1411 = vmul.f32 %v1379, 0.7978846
        %v1412 = vmul.f32 %v1380, 0.7978846
        %v1413 = vmul.f32 %v1381, 0.7978846
        %v1414 = vmul.f32 %v1382, 0.7978846
        %v1415 = vmul.f32 %v1383, 0.7978846
        %v1416 = vmul.f32 %v1384, 0.7978846
        %v1417 = vmul.f32 %v1385, 0.7978846
        %v1418 = vmul.f32 %v1386, 0.7978846
        %v1419 = vmul.f32 %v1387, 0.7978846
        %v1420 = vtanh.pop %v1388
        %v1421 = vtanh.pop %v1389
        %v1422 = vtanh.pop %v1390
        %v1423 = vtanh.pop %v1391
        %v1424 = vtanh.pop %v1392
        %v1425 = vtanh.pop %v1393
        %v1426 = vtanh.pop %v1394
        %v1427 = vtanh.pop %v1395
        %v1428 = vtanh.pop %v1396
        %v1429 = vtanh.pop %v1397
        %v1430 = vtanh.pop %v1398
        %v1431 = vtanh.pop %v1399
        %v1432 = vtanh.pop %v1400
        %v1433 = vtanh.pop %v1401
        %v1434 = vtanh.pop %v1402
        %v1435 = vtanh.pop %v1403
        %v1436 = vtanh.pop %v1404
        %v1437 = vtanh.pop %v1405
        %v1438 = vtanh.pop %v1406
        %v1439 = vtanh.pop %v1407
        %v1440 = vtanh.pop %v1408
        %v1441 = vtanh.pop %v1409
        %v1442 = vtanh.pop %v1410
        %v1443 = vtanh.pop %v1411
        %v1444 = vtanh.pop %v1412
        %v1445 = vtanh.pop %v1413
        %v1446 = vtanh.pop %v1414
        %v1447 = vtanh.pop %v1415
        %v1448 = vtanh.pop %v1416
        %v1449 = vtanh.pop %v1417
        %v1450 = vtanh.pop %v1418
        %v1451 = vtanh.pop %v1419
        %v1452 = vadd.f32 %v1420, 1.0
        %v1453 = vadd.f32 %v1421, 1.0
        %v1454 = vadd.f32 %v1422, 1.0
        %v1455 = vadd.f32 %v1423, 1.0
        %v1456 = vadd.f32 %v1424, 1.0
        %v1457 = vadd.f32 %v1425, 1.0
        %v1458 = vadd.f32 %v1426, 1.0
        %v1459 = vadd.f32 %v1427, 1.0
        %v1460 = vadd.f32 %v1428, 1.0
        %v1461 = vadd.f32 %v1429, 1.0
        %v1462 = vadd.f32 %v1430, 1.0
        %v1463 = vadd.f32 %v1431, 1.0
        %v1464 = vadd.f32 %v1432, 1.0
        %v1465 = vadd.f32 %v1433, 1.0
        %v1466 = vadd.f32 %v1434, 1.0
        %v1467 = vadd.f32 %v1435, 1.0
        %v1468 = vadd.f32 %v1436, 1.0
        %v1469 = vadd.f32 %v1437, 1.0
        %v1470 = vadd.f32 %v1438, 1.0
        %v1471 = vadd.f32 %v1439, 1.0
        %v1472 = vadd.f32 %v1440, 1.0
        %v1473 = vadd.f32 %v1441, 1.0
        %v1474 = vadd.f32 %v1442, 1.0
        %v1475 = vadd.f32 %v1443, 1.0
        %v1476 = vadd.f32 %v1444, 1.0
        %v1477 = vadd.f32 %v1445, 1.0
        %v1478 = vadd.f32 %v1446, 1.0
        %v1479 = vadd.f32 %v1447, 1.0
        %v1480 = vadd.f32 %v1448, 1.0
        %v1481 = vadd.f32 %v1449, 1.0
        %v1482 = vadd.f32 %v1450, 1.0
        %v1483 = vadd.f32 %v1451, 1.0
        %v1484 = vmul.f32 %v1228, %v1452
        %v1485 = vmul.f32 %v1229, %v1453
        %v1486 = vmul.f32 %v1230, %v1454
        %v1487 = vmul.f32 %v1231, %v1455
        %v1488 = vmul.f32 %v1232, %v1456
        %v1489 = vmul.f32 %v1233, %v1457
        %v1490 = vmul.f32 %v1234, %v1458
        %v1491 = vmul.f32 %v1235, %v1459
        %v1492 = vmul.f32 %v1236, %v1460
        %v1493 = vmul.f32 %v1237, %v1461
        %v1494 = vmul.f32 %v1238, %v1462
        %v1495 = vmul.f32 %v1239, %v1463
        %v1496 = vmul.f32 %v1240, %v1464
        %v1497 = vmul.f32 %v1241, %v1465
        %v1498 = vmul.f32 %v1242, %v1466
        %v1499 = vmul.f32 %v1243, %v1467
        %v1500 = vmul.f32 %v1244, %v1468
        %v1501 = vmul.f32 %v1245, %v1469
        %v1502 = vmul.f32 %v1246, %v1470
        %v1503 = vmul.f32 %v1247, %v1471
        %v1504 = vmul.f32 %v1248, %v1472
        %v1505 = vmul.f32 %v1249, %v1473
        %v1506 = vmul.f32 %v1250, %v1474
        %v1507 = vmul.f32 %v1251, %v1475
        %v1508 = vmul.f32 %v1252, %v1476
        %v1509 = vmul.f32 %v1253, %v1477
        %v1510 = vmul.f32 %v1254, %v1478
        %v1511 = vmul.f32 %v1255, %v1479
        %v1512 = vmul.f32 %v1256, %v1480
        %v1513 = vmul.f32 %v1257, %v1481
        %v1514 = vmul.f32 %v1258, %v1482
        %v1515 = vmul.f32 %v1259, %v1483
        %v1516 = vpack.c.bf16 %v1488, %v1484
        %v1517 = vpack.c.bf16 %v1489, %v1485
        %v1518 = vpack.c.bf16 %v1490, %v1486
        %v1519 = vpack.c.bf16 %v1491, %v1487
        %v1520 = vpack.c.bf16 %v1496, %v1492
        %v1521 = vpack.c.bf16 %v1497, %v1493
        %v1522 = vpack.c.bf16 %v1498, %v1494
        %v1523 = vpack.c.bf16 %v1499, %v1495
        %v1524 = vpack.c.bf16 %v1504, %v1500
        %v1525 = vpack.c.bf16 %v1505, %v1501
        %v1526 = vpack.c.bf16 %v1506, %v1502
        %v1527 = vpack.c.bf16 %v1507, %v1503
        %v1528 = vpack.c.bf16 %v1512, %v1508
        %v1529 = vpack.c.bf16 %v1513, %v1509
        %v1530 = vpack.c.bf16 %v1514, %v1510
        %v1531 = vpack.c.bf16 %v1515, %v1511
        %v1532 = vld [vmem:[%s349] sm:$0xf]
        %v1533 = vld [vmem:[%s349 + $0x4] sm:$0xf]
        %v1534 = vld [vmem:[%s349 + $0x8] sm:$0xf]
        %v1535 = vld [vmem:[%s349 + $0xc] sm:$0xf]
        %v1536 = vld [vmem:[%s349 + $0x10] sm:$0xf]
        %v1537 = vld [vmem:[%s349 + $0x14] sm:$0xf]
        %v1538 = vld [vmem:[%s349 + $0x18] sm:$0xf]
        %v1539 = vld [vmem:[%s349 + $0x1c] sm:$0xf]
        %v1540 = vld [vmem:[%s349 + $0x20] sm:$0xf]
        %v1541 = vld [vmem:[%s349 + $0x24] sm:$0xf]
        %v1542 = vld [vmem:[%s349 + $0x28] sm:$0xf]
        %v1543 = vld [vmem:[%s349 + $0x2c] sm:$0xf]
        %v1544 = vld [vmem:[%s349 + $0x30] sm:$0xf]
        %v1545 = vld [vmem:[%s349 + $0x34] sm:$0xf]
        %v1546 = vld [vmem:[%s349 + $0x38] sm:$0xf]
        %v1547 = vld [vmem:[%s349 + $0x3c] sm:$0xf]
        %v1548 = vld [vmem:[%s349 + $0x40] sm:$0xf]
        %v1549 = vld [vmem:[%s349 + $0x44] sm:$0xf]
        %v1550 = vld [vmem:[%s349 + $0x48] sm:$0xf]
        %v1551 = vld [vmem:[%s349 + $0x4c] sm:$0xf]
        %v1552 = vld [vmem:[%s349 + $0x50] sm:$0xf]
        %v1553 = vld [vmem:[%s349 + $0x54] sm:$0xf]
        %v1554 = vld [vmem:[%s349 + $0x58] sm:$0xf]
        %v1555 = vld [vmem:[%s349 + $0x5c] sm:$0xf]
        %v1556 = vld [vmem:[%s349 + $0x60] sm:$0xf]
        %v1557 = vld [vmem:[%s349 + $0x64] sm:$0xf]
        %v1558 = vld [vmem:[%s349 + $0x68] sm:$0xf]
        %v1559 = vld [vmem:[%s349 + $0x6c] sm:$0xf]
        %v1560 = vld [vmem:[%s349 + $0x70] sm:$0xf]
        %v1561 = vld [vmem:[%s349 + $0x74] sm:$0xf]
        %v1562 = vld [vmem:[%s349 + $0x78] sm:$0xf]
        %v1563 = vld [vmem:[%s349 + $0x7c] sm:$0xf]
        %v1564 = vld [vmem:[%s349 + $0x80] sm:$0xf]
        %v1565 = vld [vmem:[%s349 + $0x84] sm:$0xf]
        %v1566 = vld [vmem:[%s349 + $0x88] sm:$0xf]
        %v1567 = vld [vmem:[%s349 + $0x8c] sm:$0xf]
        %v1568 = vld [vmem:[%s349 + $0x90] sm:$0xf]
        %v1569 = vld [vmem:[%s349 + $0x94] sm:$0xf]
        %v1570 = vld [vmem:[%s349 + $0x98] sm:$0xf]
        %v1571 = vld [vmem:[%s349 + $0x9c] sm:$0xf]
        %v1572 = vld [vmem:[%s349 + $0xa0] sm:$0xf]
        %v1573 = vld [vmem:[%s349 + $0xa4] sm:$0xf]
        %v1574 = vld [vmem:[%s349 + $0xa8] sm:$0xf]
        %v1575 = vld [vmem:[%s349 + $0xac] sm:$0xf]
        %v1576 = vld [vmem:[%s349 + $0xb0] sm:$0xf]
        %v1577 = vld [vmem:[%s349 + $0xb4] sm:$0xf]
        %v1578 = vld [vmem:[%s349 + $0xb8] sm:$0xf]
        %v1579 = vld [vmem:[%s349 + $0xbc] sm:$0xf]
        %v1580 = vld [vmem:[%s349 + $0xc0] sm:$0xf]
        %v1581 = vld [vmem:[%s349 + $0xc4] sm:$0xf]
        %v1582 = vld [vmem:[%s349 + $0xc8] sm:$0xf]
        %v1583 = vld [vmem:[%s349 + $0xcc] sm:$0xf]
        %v1584 = vld [vmem:[%s349 + $0xd0] sm:$0xf]
        %v1585 = vld [vmem:[%s349 + $0xd4] sm:$0xf]
        %v1586 = vld [vmem:[%s349 + $0xd8] sm:$0xf]
        %v1587 = vld [vmem:[%s349 + $0xdc] sm:$0xf]
        %v1588 = vld [vmem:[%s349 + $0xe0] sm:$0xf]
        %v1589 = vld [vmem:[%s349 + $0xe4] sm:$0xf]
        %v1590 = vld [vmem:[%s349 + $0xe8] sm:$0xf]
        %v1591 = vld [vmem:[%s349 + $0xec] sm:$0xf]
        %v1592 = vld [vmem:[%s349 + $0xf0] sm:$0xf]
        %v1593 = vld [vmem:[%s349 + $0xf4] sm:$0xf]
        %v1594 = vld [vmem:[%s349 + $0xf8] sm:$0xf]
        %v1595 = vld [vmem:[%s349 + $0xfc] sm:$0xf]
        %v1660 = vunpack.c.l.b16 %v1532
        %v1661 = vunpack.c.l.b16 %v1533
        %v1662 = vunpack.c.l.b16 %v1534
        %v1663 = vunpack.c.l.b16 %v1535
        %v1664 = vunpack.c.l.b16 %v1536
        %v1665 = vunpack.c.l.b16 %v1537
        %v1666 = vunpack.c.l.b16 %v1538
        %v1667 = vunpack.c.l.b16 %v1539
        %v1668 = vunpack.c.l.b16 %v1540
        %v1669 = vunpack.c.l.b16 %v1541
        %v1670 = vunpack.c.l.b16 %v1542
        %v1671 = vunpack.c.l.b16 %v1543
        %v1672 = vunpack.c.l.b16 %v1544
        %v1673 = vunpack.c.l.b16 %v1545
        %v1674 = vunpack.c.l.b16 %v1546
        %v1675 = vunpack.c.l.b16 %v1547
        %v1676 = vunpack.c.l.b16 %v1548
        %v1677 = vunpack.c.l.b16 %v1549
        %v1678 = vunpack.c.l.b16 %v1550
        %v1679 = vunpack.c.l.b16 %v1551
        %v1680 = vunpack.c.l.b16 %v1552
        %v1681 = vunpack.c.l.b16 %v1553
        %v1682 = vunpack.c.l.b16 %v1554
        %v1683 = vunpack.c.l.b16 %v1555
        %v1684 = vunpack.c.l.b16 %v1556
        %v1685 = vunpack.c.l.b16 %v1557
        %v1686 = vunpack.c.l.b16 %v1558
        %v1687 = vunpack.c.l.b16 %v1559
        %v1688 = vunpack.c.l.b16 %v1560
        %v1689 = vunpack.c.l.b16 %v1561
        %v1690 = vunpack.c.l.b16 %v1562
        %v1691 = vunpack.c.l.b16 %v1563
        %v1692 = vunpack.c.l.b16 %v1564
        %v1693 = vunpack.c.l.b16 %v1565
        %v1694 = vunpack.c.l.b16 %v1566
        %v1695 = vunpack.c.l.b16 %v1567
        %v1696 = vunpack.c.l.b16 %v1568
        %v1697 = vunpack.c.l.b16 %v1569
        %v1698 = vunpack.c.l.b16 %v1570
        %v1699 = vunpack.c.l.b16 %v1571
        %v1700 = vunpack.c.l.b16 %v1572
        %v1701 = vunpack.c.l.b16 %v1573
        %v1702 = vunpack.c.l.b16 %v1574
        %v1703 = vunpack.c.l.b16 %v1575
        %v1704 = vunpack.c.l.b16 %v1576
        %v1705 = vunpack.c.l.b16 %v1577
        %v1706 = vunpack.c.l.b16 %v1578
        %v1707 = vunpack.c.l.b16 %v1579
        %v1708 = vunpack.c.l.b16 %v1580
        %v1709 = vunpack.c.l.b16 %v1581
        %v1710 = vunpack.c.l.b16 %v1582
        %v1711 = vunpack.c.l.b16 %v1583
        %v1712 = vunpack.c.l.b16 %v1584
        %v1713 = vunpack.c.l.b16 %v1585
        %v1714 = vunpack.c.l.b16 %v1586
        %v1715 = vunpack.c.l.b16 %v1587
        %v1716 = vunpack.c.l.b16 %v1588
        %v1717 = vunpack.c.l.b16 %v1589
        %v1718 = vunpack.c.l.b16 %v1590
        %v1719 = vunpack.c.l.b16 %v1591
        %v1720 = vunpack.c.l.b16 %v1592
        %v1721 = vunpack.c.l.b16 %v1593
        %v1722 = vunpack.c.l.b16 %v1594
        %v1723 = vunpack.c.l.b16 %v1595
        %v1724 = vpack.c.b16 %v1661, %v1660
        %v1725 = vpack.c.b16 %v1663, %v1662
        %v1726 = vpack.c.b16 %v1665, %v1664
        %v1727 = vpack.c.b16 %v1667, %v1666
        %v1728 = vpack.c.b16 %v1669, %v1668
        %v1729 = vpack.c.b16 %v1671, %v1670
        %v1730 = vpack.c.b16 %v1673, %v1672
        %v1731 = vpack.c.b16 %v1675, %v1674
        %v1732 = vpack.c.b16 %v1677, %v1676
        %v1733 = vpack.c.b16 %v1679, %v1678
        %v1734 = vpack.c.b16 %v1681, %v1680
        %v1735 = vpack.c.b16 %v1683, %v1682
        %v1736 = vpack.c.b16 %v1685, %v1684
        %v1737 = vpack.c.b16 %v1687, %v1686
        %v1738 = vpack.c.b16 %v1689, %v1688
        %v1739 = vpack.c.b16 %v1691, %v1690
        %v1740 = vpack.c.b16 %v1693, %v1692
        %v1741 = vpack.c.b16 %v1695, %v1694
        %v1742 = vpack.c.b16 %v1697, %v1696
        %v1743 = vpack.c.b16 %v1699, %v1698
        %v1744 = vpack.c.b16 %v1701, %v1700
        %v1745 = vpack.c.b16 %v1703, %v1702
        %v1746 = vpack.c.b16 %v1705, %v1704
        %v1747 = vpack.c.b16 %v1707, %v1706
        %v1748 = vpack.c.b16 %v1709, %v1708
        %v1749 = vpack.c.b16 %v1711, %v1710
        %v1750 = vpack.c.b16 %v1713, %v1712
        %v1751 = vpack.c.b16 %v1715, %v1714
        %v1752 = vpack.c.b16 %v1717, %v1716
        %v1753 = vpack.c.b16 %v1719, %v1718
        %v1754 = vpack.c.b16 %v1721, %v1720
        %v1755 = vpack.c.b16 %v1723, %v1722
        %1788 = vmatprep.subr.bf16.mxu0 0
        %1789 = vmatpush1.bf16.msra.mxu0 %v1724
        %1790 = vmatprep.subr.bf16.mxu0 0
        %1791 = vmatpush1.bf16.msra.mxu0 %v1725
        %1792 = vmatprep.subr.bf16.mxu0 0
        %1793 = vmatpush1.bf16.msra.mxu0 %v1726
        %1794 = vmatprep.subr.bf16.mxu0 0
        %1795 = vmatpush1.bf16.msra.mxu0 %v1727
        %1796 = vmatprep.subr.bf16.mxu0 0
        %1797 = vmatpush1.bf16.msra.mxu0 %v1728
        %1798 = vmatprep.subr.bf16.mxu0 0
        %1799 = vmatpush1.bf16.msra.mxu0 %v1729
        %1800 = vmatprep.subr.bf16.mxu0 0
        %1801 = vmatpush1.bf16.msra.mxu0 %v1730
        %1802 = vmatprep.subr.bf16.mxu0 0
        %1803 = vmatpush1.bf16.msra.mxu0 %v1731
        %1804 = vmatprep.subr.bf16.mxu0 0
        %1805 = vmatpush1.bf16.msra.mxu0 %v1732
        %1806 = vmatprep.subr.bf16.mxu0 0
        %1807 = vmatpush1.bf16.msra.mxu0 %v1733
        %1808 = vmatprep.subr.bf16.mxu0 0
        %1809 = vmatpush1.bf16.msra.mxu0 %v1734
        %1810 = vmatprep.subr.bf16.mxu0 0
        %1811 = vmatpush1.bf16.msra.mxu0 %v1735
        %1812 = vmatprep.subr.bf16.mxu0 0
        %1813 = vmatpush1.bf16.msra.mxu0 %v1736
        %1814 = vmatprep.subr.bf16.mxu0 0
        %1815 = vmatpush1.bf16.msra.mxu0 %v1737
        %1816 = vmatprep.subr.bf16.mxu0 0
        %1817 = vmatpush1.bf16.msra.mxu0 %v1738
        %1818 = vmatprep.subr.bf16.mxu0 0
        %1819 = vmatpush1.bf16.msra.mxu0 %v1739
        %1820 = vmatprep.mubr.bf16.mxu0 %v1517
        %1821 = vmatmul.mubr.bf16.gmra.mrb[0].mxu0 %v1516
        %v1822 = vpop.f32.mrb[0].mxu0
        %v1823 = vadd.f32 %v448, %v1822
        %v1824 = vpop.f32.mrb[0].mxu0
        %v1825 = vpop.f32.mrb[0].mxu0
        %v1826 = vadd.f32 %v448, %v1825
        %v1827 = vpop.f32.mrb[0].mxu0
        %1828 = vmatprep.mubr.bf16.mxu0 %v1521
        %1829 = vmatmul.mubr.bf16.gmra.mrb[0].mxu0 %v1520
        %v1830 = vpop.f32.mrb[0].mxu0
        %v1831 = vadd.f32 %v448, %v1830
        %v1832 = vpop.f32.mrb[0].mxu0
        %v1833 = vpop.f32.mrb[0].mxu0
        %v1834 = vadd.f32 %v448, %v1833
        %v1835 = vpop.f32.mrb[0].mxu0
        %1836 = vmatprep.mubr.bf16.mxu0 %v1525
        %1837 = vmatmul.mubr.bf16.gmra.mrb[0].mxu0 %v1524
        %v1838 = vpop.f32.mrb[0].mxu0
        %v1839 = vadd.f32 %v448, %v1838
        %v1840 = vpop.f32.mrb[0].mxu0
        %v1841 = vpop.f32.mrb[0].mxu0
        %v1842 = vadd.f32 %v448, %v1841
        %v1843 = vpop.f32.mrb[0].mxu0
        %1844 = vmatprep.mubr.bf16.mxu0 %v1529
        %1845 = vmatmul.mubr.bf16.gmra.mrb[0].mxu0 %v1528
        %v1846 = vpop.f32.mrb[0].mxu0
        %v1847 = vadd.f32 %v448, %v1846
        %v1848 = vpop.f32.mrb[0].mxu0
        %v1849 = vpop.f32.mrb[0].mxu0
        %v1850 = vadd.f32 %v448, %v1849
        %v1851 = vpop.f32.mrb[0].mxu0
        %1852 = vdwg.mxu0
        %1853 = vmatprep.subr.bf16.mxu0 0
        %1854 = vmatpush1.bf16.msra.mxu0 %v1740
        %1855 = vmatprep.subr.bf16.mxu0 0
        %1856 = vmatpush1.bf16.msra.mxu0 %v1741
        %1857 = vmatprep.subr.bf16.mxu0 0
        %1858 = vmatpush1.bf16.msra.mxu0 %v1742
        %1859 = vmatprep.subr.bf16.mxu0 0
        %1860 = vmatpush1.bf16.msra.mxu0 %v1743
        %1861 = vmatprep.subr.bf16.mxu0 0
        %1862 = vmatpush1.bf16.msra.mxu0 %v1744
        %1863 = vmatprep.subr.bf16.mxu0 0
        %1864 = vmatpush1.bf16.msra.mxu0 %v1745
        %1865 = vmatprep.subr.bf16.mxu0 0
        %1866 = vmatpush1.bf16.msra.mxu0 %v1746
        %1867 = vmatprep.subr.bf16.mxu0 0
        %1868 = vmatpush1.bf16.msra.mxu0 %v1747
        %1869 = vmatprep.subr.bf16.mxu0 0
        %1870 = vmatpush1.bf16.msra.mxu0 %v1748
        %1871 = vmatprep.subr.bf16.mxu0 0
        %1872 = vmatpush1.bf16.msra.mxu0 %v1749
        %1873 = vmatprep.subr.bf16.mxu0 0
        %1874 = vmatpush1.bf16.msra.mxu0 %v1750
        %1875 = vmatprep.subr.bf16.mxu0 0
        %1876 = vmatpush1.bf16.msra.mxu0 %v1751
        %1877 = vmatprep.subr.bf16.mxu0 0
        %1878 = vmatpush1.bf16.msra.mxu0 %v1752
        %1879 = vmatprep.subr.bf16.mxu0 0
        %1880 = vmatpush1.bf16.msra.mxu0 %v1753
        %1881 = vmatprep.subr.bf16.mxu0 0
        %1882 = vmatpush1.bf16.msra.mxu0 %v1754
        %1883 = vmatprep.subr.bf16.mxu0 0
        %1884 = vmatpush1.bf16.msra.mxu0 %v1755
        %1885 = vmatprep.mubr.bf16.mxu0 %v1519
        %1886 = vmatmul.mubr.bf16.gmra.mrb[0].mxu0 %v1518
        %v1887 = vpop.f32.mrb[0].mxu0
        %v1888 = vadd.f32 %v1823, %v1887
        %v1889 = vpop.f32.mrb[0].mxu0
        %v1890 = vpop.f32.mrb[0].mxu0
        %v1891 = vadd.f32 %v1826, %v1890
        %v1892 = vpop.f32.mrb[0].mxu0
        %1893 = vmatprep.mubr.bf16.mxu0 %v1523
        %1894 = vmatmul.mubr.bf16.gmra.mrb[0].mxu0 %v1522
        %v1895 = vpop.f32.mrb[0].mxu0
        %v1896 = vadd.f32 %v1831, %v1895
        %v1897 = vpop.f32.mrb[0].mxu0
        %v1898 = vpop.f32.mrb[0].mxu0
        %v1899 = vadd.f32 %v1834, %v1898
        %v1900 = vpop.f32.mrb[0].mxu0
        %1901 = vmatprep.mubr.bf16.mxu0 %v1527
        %1902 = vmatmul.mubr.bf16.gmra.mrb[0].mxu0 %v1526
        %v1903 = vpop.f32.mrb[0].mxu0
        %v1904 = vadd.f32 %v1839, %v1903
        %v1905 = vpop.f32.mrb[0].mxu0
        %v1906 = vpop.f32.mrb[0].mxu0
        %v1907 = vadd.f32 %v1842, %v1906
        %v1908 = vpop.f32.mrb[0].mxu0
        %1909 = vmatprep.mubr.bf16.mxu0 %v1531
        %1910 = vmatmul.mubr.bf16.gmra.mrb[0].mxu0 %v1530
        %v1911 = vpop.f32.mrb[0].mxu0
        %v1912 = vadd.f32 %v1847, %v1911
        %v1913 = vpop.f32.mrb[0].mxu0
        %v1914 = vpop.f32.mrb[0].mxu0
        %v1915 = vadd.f32 %v1850, %v1914
        %v1916 = vpop.f32.mrb[0].mxu0
        %1917 = vdwg.mxu0
        %v1918 = vadd.f32 %v1888, %v753
        %v1919 = vadd.f32 %v1891, %v754
        %v1920 = vadd.f32 %v1896, %v755
        %v1921 = vadd.f32 %v1899, %v756
        %v1922 = vadd.f32 %v1904, %v757
        %v1923 = vadd.f32 %v1907, %v758
        %v1924 = vadd.f32 %v1912, %v759
        %v1925 = vadd.f32 %v1915, %v760
        %1926 = vst [vmem:[#allocation11] sm:$0xff] %v1918
        %1927 = vst [vmem:[#allocation11 + $0x8] sm:$0xff] %v1919
        %1928 = vst [vmem:[#allocation11 + $0x10] sm:$0xff] %v1920
        %1929 = vst [vmem:[#allocation11 + $0x18] sm:$0xff] %v1921
        %1930 = vst [vmem:[#allocation11 + $0x20] sm:$0xff] %v1922
        %1931 = vst [vmem:[#allocation11 + $0x28] sm:$0xff] %v1923
        %1932 = vst [vmem:[#allocation11 + $0x30] sm:$0xff] %v1924
        %1933 = vst [vmem:[#allocation11 + $0x38] sm:$0xff] %v1925
        // Predicated region
        $region69: #{tpu_custom_call.1} parent=39 // pred_check
          %p1934 = pneg %p184
        $region70: #{tpu_custom_call.1} parent=39 // pred_check_branch
          %1936 = sbr.rel (%p1934) target = $region72
        $region71: #{tpu_custom_call.1} parent=39 // pred_region
          %s1937 = smul.u32 4, %s28
          %s1939 = ssub.s32 1024, 1024
          %1940 = vsyncadd [#allocation4], %s1939
          %s1941 = smul.addr %s1937, 2
          %s1942 = smul.addr %s1941, 128
          %s1943 = scalar_lea.hbm %s5, %s1942
          %s1944 = sshll.u32 [#allocation11], 4
          %s1945 = int_to_ptr.vmem [resolvable:$true] %s1944
          %1950 = dma.vmem_to_hbm [thread:$0]  %s1945, 1024, %s1943, [#allocation4], 128, 128, 8
        $region72: #{tpu_custom_call.1} parent=39 // pred_fallthru
          _
        // Predicated region
        $region73: #{tpu_custom_call.1} parent=39 // pred_check
          %p1951 = pneg %p184
        $region74: #{tpu_custom_call.1} parent=39 // pred_check_branch
          %1953 = sbr.rel (%p1951) target = $region76
        $region75: #{tpu_custom_call.1} parent=39 // pred_region
          %1954 = dma.done [#allocation4], 1024
        $region76: #{tpu_custom_call.1} parent=39 // pred_fallthru
          _
      $region40: #{tpu_custom_call.1} parent=5 // pred_fallthru
        _
      %p1955 = scmp.le.s32.totalorder 2, %s19
      // Predicated region
      $region77: #{tpu_custom_call.1} parent=5 // pred_check
        %p1956 = pneg %p1955
      $region78: #{tpu_custom_call.1} parent=5 // pred_check_branch
        %1958 = sbr.rel (%p1956) target = $region80
      $region79: #{tpu_custom_call.1} parent=5 // pred_region
        %s1959 = ssub.s32 %s19, 2
      $region80: #{tpu_custom_call.1} parent=5 // pred_fallthru
        _
    $region6: #{tpu_custom_call.1} parent=1 // loop_footer
      %s23 = sadd.s32 1, %s19
    $region7: #{tpu_custom_call.1} parent=1 // loop_footer_branch
      %18 = sbr.rel target = $region3
    $region8: #{tpu_custom_call.1} parent=1 // loop_exit
      _
    %1960 = vsyncpa [#allocation3], 1
    %s1961 = scalar_lea.sflag [#allocation3], 1
    %1962 = vsyncpa %s1961, 1
    %1963 = vsyncpa [#allocation6], 1
    %s1964 = scalar_lea.sflag [#allocation6], 1
    %1965 = vsyncpa %s1964, 1
    %1966 = vsyncpa [#allocation9], 1
    %s1967 = scalar_lea.sflag [#allocation9], 1
    %1968 = vsyncpa %s1967, 1
    %1969 = vsyncpa [#allocation4], 1
    %s1970 = scalar_lea.sflag [#allocation4], 1
    %1971 = vsyncpa %s1970, 1

</llo_original>
